<compile_context>
chip_gen: v5e
topology: v5e:2x2
jax: 0.10.0
libtpu: 0.0.40
codegen_flags: <defaults>
</compile_context>

<pallas_src>
from functools import partial

import numpy as np
import jax
import jax.numpy as jnp
from jax import lax
from jax.experimental import pallas as pl
from jax.experimental.pallas import tpu as pltpu

THRESH = 0.5
DECAY = 0.2
BN_EPS = 1e-5


def _round_up(x, m):
    return (x + m - 1) // m * m


def _snn_kernel(w_ref, x_ref, gamma_ref, beta_ref, mask_ref, *out_refs,
                offsets, mcomp, m_true, return_mem):
    """Fused conv (in-kernel im2col) + training BN + spike + sparsity.

    w_ref     : (KH*KW, OC, C)  per-tap conv weights
    x_ref     : (C, Mx)         input flattened (n, h, w) on the lane axis, zero lane-padded
    gamma/beta: (OC, 1)
    mask_ref  : (1, Mcomp)      1.0 on valid conv-output positions, else 0.0
    outputs   : spike (OC, Mcomp) [, mem (OC, Mcomp)], sparsity (1, 1) in SMEM
    """
    if return_mem:
        spike_ref, mem_ref, spars_ref = out_refs
    else:
        spike_ref, spars_ref = out_refs

    mask = mask_ref[...]                                        # (1, Mcomp)

    # ---- conv as KH*KW shifted sub-matmuls on the MXU, f32 accumulation ----
    conv = None
    for idx, d in enumerate(offsets):                           # static Python loop (unrolled)
        xs = x_ref[:, pl.ds(d, mcomp)]                          # (C, Mcomp), static lane offset
        part = jnp.dot(w_ref[idx], xs, preferred_element_type=jnp.float32)
        conv = part if conv is None else conv + part            # (OC, Mcomp) f32

    # ---- BatchNorm2d (training): masked batch stats over the m_true valid positions ----
    inv_m = 1.0 / m_true
    mean = jnp.sum(conv * mask, axis=1, keepdims=True) * inv_m              # (OC, 1)
    centered = conv - mean                                                  # conv dies here
    var = jnp.sum(centered * centered * mask, axis=1, keepdims=True) * inv_m  # biased var
    scale = gamma_ref[...] * lax.rsqrt(var + BN_EPS)                        # (OC, 1)
    out = centered * scale + beta_ref[...]                                  # (OC, Mcomp)

    # ---- SNN membrane / spike (is_first == 1 -> mem starts at 0, so mem == out) ----
    spike = (out > THRESH).astype(jnp.float32)
    spike_ref[...] = spike
    if return_mem:
        mem_ref[...] = out * DECAY * (1.0 - spike)

    # ---- sparsity = mean(spike) over valid N*OC*OH*OW elements, written to SMEM ----
    oc = spike.shape[0]
    spars_ref[0, 0] = jnp.sum(spike * mask) * (1.0 / (oc * m_true))


@partial(jax.jit, static_argnames=("kernel_size", "stride", "dilation", "padding",
                                   "return_mem", "mxu_bf16"))
def snn_2d_aspp_bn_forward(x, weight, gamma, beta, *, kernel_size=3, stride=1,
                           dilation=1, padding=0, return_mem=False, mxu_bf16=False):
    """x: (N, C, H, W) f32.  weight: (OC, C, KH, KW).

    Returns (spike NCHW, sparsity) or (spike NCHW, mem NCHW, sparsity) if return_mem.
    """
    n, c, h, w = x.shape
    oc = weight.shape[0]
    kh = kw = kernel_size

    if padding > 0:
        x = jnp.pad(x, ((0, 0), (0, 0), (padding, padding), (padding, padding)))
    hp, wp = h + 2 * padding, w + 2 * padding
    oh = (hp - dilation * (kh - 1) - 1) // stride + 1
    ow = (wp - dilation * (kw - 1) - 1) // stride + 1
    m_true = n * oh * ow                 # BN / sparsity population size
    m_flat = n * hp * wp                 # stride-1 conv grid, flattened on the lane axis
    mcomp = _round_up(m_flat, 128)       # lane-aligned compute width
    offsets = tuple(i * dilation * wp + j * dilation
                    for i in range(kh) for j in range(kw))
    mx = _round_up(mcomp + offsets[-1], 128)   # input lane width: all tap slices stay in-bounds

    in_dtype = jnp.bfloat16 if mxu_bf16 else jnp.float32

    # x: (N, C, Hp, Wp) -> (C, N*Hp*Wp) lane-dense, zero lane-padded; read exactly once.
    x_flat = x.astype(in_dtype).transpose(1, 0, 2, 3).reshape(c, m_flat)
    x_flat = jnp.pad(x_flat, ((0, 0), (0, mx - m_flat)))

    # weight: (OC, C, KH, KW) -> (KH*KW, OC, C); tap order matches `offsets` (i outer, j inner).
    w3 = weight.astype(in_dtype).transpose(2, 3, 0, 1).reshape(kh * kw, oc, c)

    gamma2 = gamma.reshape(oc, 1).astype(jnp.float32)
    beta2 = beta.reshape(oc, 1).astype(jnp.float32)

    # Compile-time validity mask over the Mcomp stride-1 conv positions.
    p = np.arange(mcomp)
    rem = p % (hp * wp)
    ohf, owf = rem // wp, rem % wp
    valid = ((p < m_flat) & (ohf % stride == 0) & (owf % stride == 0)
             & (ohf // stride < oh) & (owf // stride < ow))
    mask = jnp.asarray(valid.astype(np.float32).reshape(1, mcomp))

    vmem = pl.BlockSpec(memory_space=pltpu.MemorySpace.VMEM)
    smem = pl.BlockSpec(memory_space=pltpu.MemorySpace.SMEM)
    out_shape = [jax.ShapeDtypeStruct((oc, mcomp), jnp.float32)]
    out_specs = [vmem]
    if return_mem:
        out_shape.append(jax.ShapeDtypeStruct((oc, mcomp), jnp.float32))
        out_specs.append(vmem)
    out_shape.append(jax.ShapeDtypeStruct((1, 1), jnp.float32))   # sparsity scalar
    out_specs.append(smem)

    kern = partial(_snn_kernel, offsets=offsets, mcomp=mcomp,
                   m_true=m_true, return_mem=return_mem)
    outs = pl.pallas_call(
        kern,
        out_shape=tuple(out_shape),
        in_specs=(vmem,) * 5,
        out_specs=tuple(out_specs),
    )(w3, x_flat, gamma2, beta2, mask)

    spars = outs[-1][0, 0]

    def to_nchw(full):
        # (OC, Mcomp) -> valid (OC, N, OH, OW) -> (N, OC, OH, OW); only cheap slices +
        # a leading-axis swap (no minor-dim transpose).
        y = full[:, :m_flat].reshape(oc, n, hp, wp)
        y = y[:, :, 0:(oh - 1) * stride + 1:stride, 0:(ow - 1) * stride + 1:stride]
        return y.transpose(1, 0, 2, 3)

    spike = to_nchw(outs[0])
    if return_mem:
        return spike, to_nchw(outs[1]), spars
    return spike, spars


def _reference_forward(x, weight, gamma, beta, *, stride=1, dilation=1, padding=0):
    """Pure-JAX reference of the same semantics (correctness sanity check)."""
    conv = lax.conv_general_dilated(
        x, weight, window_strides=(stride, stride),
        padding=[(padding, padding), (padding, padding)],
        rhs_dilation=(dilation, dilation),
        dimension_numbers=("NCHW", "OIHW", "NCHW"))
    mean = jnp.mean(conv, axis=(0, 2, 3), keepdims=True)
    var = jnp.mean((conv - mean) ** 2, axis=(0, 2, 3), keepdims=True)
    out = (conv - mean) * lax.rsqrt(var + BN_EPS)
    out = out * gamma.reshape(1, -1, 1, 1) + beta.reshape(1, -1, 1, 1)
    spike = (out > THRESH).astype(jnp.float32)
    mem_new = out * DECAY * (1.0 - spike)
    sparsity = jnp.sum(spike) / float(np.prod(spike.shape))
    return spike, mem_new, sparsity


if __name__ == "__main__":
    # Small shapes consistent with the module: N=2, C_in=4, H=W=16, C_out=8, 3x3 conv.
    key = jax.random.PRNGKey(0)
    kx, kw_ = jax.random.split(key)
    N, C_IN, H, W = 2, 4, 16, 16
    C_OUT, KS = 8, 3

    x = jax.random.normal(kx, (N, C_IN, H, W), dtype=jnp.float32)
    fan_in = C_IN * KS * KS
    bound = 1.0 / np.sqrt(fan_in)
    weight = jax.random.uniform(kw_, (C_OUT, C_IN, KS, KS),
                                minval=-bound, maxval=bound, dtype=jnp.float32)
    gamma = jnp.ones((C_OUT,), dtype=jnp.float32)   # BatchNorm2d default weight
    beta = jnp.zeros((C_OUT,), dtype=jnp.float32)   # BatchNorm2d default bias

    # Config 1: module defaults (kernel_size=3, stride=1, dilation=1, padding=0), with mem.
    spike, mem, spars = snn_2d_aspp_bn_forward(
        x, weight, gamma, beta, kernel_size=KS, stride=1, dilation=1, padding=0,
        return_mem=True)
    jax.block_until_ready((spike, mem, spars))
    s_ref, m_ref, sp_ref = _reference_forward(x, weight, gamma, beta,
                                              stride=1, dilation=1, padding=0)
    np.testing.assert_allclose(np.asarray(spike), np.asarray(s_ref), atol=1e-5)
    np.testing.assert_allclose(np.asarray(mem), np.asarray(m_ref), rtol=1e-4, atol=1e-4)
    np.testing.assert_allclose(float(spars), float(sp_ref), rtol=1e-5, atol=1e-6)

    # Default path: spike + sparsity only (halves output HBM writeback).
    spike2, spars2 = snn_2d_aspp_bn_forward(x, weight, gamma, beta, kernel_size=KS)
    jax.block_until_ready((spike2, spars2))
    np.testing.assert_allclose(np.asarray(spike2), np.asarray(s_ref), atol=1e-5)

    # Config 2: ASPP-style dilated branch (dilation=2, padding=2) exercising the
    # dilation/padding handling of the in-kernel shifted sub-matmuls.
    spike3, mem3, spars3 = snn_2d_aspp_bn_forward(
        x, weight, gamma, beta, kernel_size=KS, stride=1, dilation=2, padding=2,
        return_mem=True)
    jax.block_until_ready((spike3, mem3, spars3))
    s_ref3, m_ref3, sp_ref3 = _reference_forward(x, weight, gamma, beta,
                                                 stride=1, dilation=2, padding=2)
    np.testing.assert_allclose(np.asarray(spike3), np.asarray(s_ref3), atol=1e-5)
    np.testing.assert_allclose(np.asarray(mem3), np.asarray(m_ref3), rtol=1e-4, atol=1e-4)
    np.testing.assert_allclose(float(spars3), float(sp_ref3), rtol=1e-5, atol=1e-6)

    print("KERNEL_OK")
</pallas_src>

<mosaic_0001>
module attributes {stable_mosaic.version = 11 : i64} {
  func.func @_snn_kernel(%arg0: memref<9x8x4xf32, #tpu.memory_space<vmem>>, %arg1: memref<4x640xf32, #tpu.memory_space<vmem>>, %arg2: memref<8x1xf32, #tpu.memory_space<vmem>>, %arg3: memref<8x1xf32, #tpu.memory_space<vmem>>, %arg4: memref<1x512xf32, #tpu.memory_space<vmem>>, %arg5: memref<8x512xf32, #tpu.memory_space<vmem>>, %arg6: memref<8x512xf32, #tpu.memory_space<vmem>>, %arg7: memref<1x1xf32, #tpu.memory_space<smem>>) attributes {dimension_semantics = [], scalar_prefetch = 0 : i64, scratch_operands = 0 : i64, tpu.core_type = #tpu.core_type<tc>} {
    %c0 = arith.constant 0 : index
    %c0_0 = arith.constant 0 : index
    %0 = vector.load %arg4[%c0, %c0_0] : memref<1x512xf32, #tpu.memory_space<vmem>>, vector<1x512xf32>
    %c0_1 = arith.constant 0 : index
    %c0_2 = arith.constant 0 : index
    %1 = vector.load %arg1[%c0_1, %c0_2] : memref<4x640xf32, #tpu.memory_space<vmem>>, vector<4x512xf32>
    %c0_3 = arith.constant 0 : index
    %c0_4 = arith.constant 0 : index
    %c0_5 = arith.constant 0 : index
    %2 = vector.load %arg0[%c0_3, %c0_4, %c0_5] : memref<9x8x4xf32, #tpu.memory_space<vmem>>, vector<1x8x4xf32>
    %3 = vector.shape_cast %2 : vector<1x8x4xf32> to vector<8x4xf32>
    %cst = arith.constant dense<0.000000e+00> : vector<8x512xf32>
    %4 = tpu.matmul %3, %1, %cst {dimension_numbers = #tpu.dot_dimension_numbers<[1], [0], [0], [1], [0, 0, 1, 1], [], []>} : vector<8x4xf32>, vector<4x512xf32>, vector<8x512xf32> -> vector<8x512xf32>
    %c0_6 = arith.constant 0 : index
    %c1 = arith.constant 1 : index
    %5 = vector.load %arg1[%c0_6, %c1] : memref<4x640xf32, #tpu.memory_space<vmem>>, vector<4x512xf32>
    %c1_7 = arith.constant 1 : index
    %c0_8 = arith.constant 0 : index
    %c0_9 = arith.constant 0 : index
    %6 = vector.load %arg0[%c1_7, %c0_8, %c0_9] : memref<9x8x4xf32, #tpu.memory_space<vmem>>, vector<1x8x4xf32>
    %7 = vector.shape_cast %6 : vector<1x8x4xf32> to vector<8x4xf32>
    %cst_10 = arith.constant dense<0.000000e+00> : vector<8x512xf32>
    %8 = tpu.matmul %7, %5, %cst_10 {dimension_numbers = #tpu.dot_dimension_numbers<[1], [0], [0], [1], [0, 0, 1, 1], [], []>} : vector<8x4xf32>, vector<4x512xf32>, vector<8x512xf32> -> vector<8x512xf32>
    %9 = arith.addf %4, %8 : vector<8x512xf32>
    %c0_11 = arith.constant 0 : index
    %c2 = arith.constant 2 : index
    %10 = vector.load %arg1[%c0_11, %c2] : memref<4x640xf32, #tpu.memory_space<vmem>>, vector<4x512xf32>
    %c2_12 = arith.constant 2 : index
    %c0_13 = arith.constant 0 : index
    %c0_14 = arith.constant 0 : index
    %11 = vector.load %arg0[%c2_12, %c0_13, %c0_14] : memref<9x8x4xf32, #tpu.memory_space<vmem>>, vector<1x8x4xf32>
    %12 = vector.shape_cast %11 : vector<1x8x4xf32> to vector<8x4xf32>
    %cst_15 = arith.constant dense<0.000000e+00> : vector<8x512xf32>
    %13 = tpu.matmul %12, %10, %cst_15 {dimension_numbers = #tpu.dot_dimension_numbers<[1], [0], [0], [1], [0, 0, 1, 1], [], []>} : vector<8x4xf32>, vector<4x512xf32>, vector<8x512xf32> -> vector<8x512xf32>
    %14 = arith.addf %9, %13 : vector<8x512xf32>
    %c0_16 = arith.constant 0 : index
    %c16 = arith.constant 16 : index
    %15 = vector.load %arg1[%c0_16, %c16] : memref<4x640xf32, #tpu.memory_space<vmem>>, vector<4x512xf32>
    %c3 = arith.constant 3 : index
    %c0_17 = arith.constant 0 : index
    %c0_18 = arith.constant 0 : index
    %16 = vector.load %arg0[%c3, %c0_17, %c0_18] : memref<9x8x4xf32, #tpu.memory_space<vmem>>, vector<1x8x4xf32>
    %17 = vector.shape_cast %16 : vector<1x8x4xf32> to vector<8x4xf32>
    %cst_19 = arith.constant dense<0.000000e+00> : vector<8x512xf32>
    %18 = tpu.matmul %17, %15, %cst_19 {dimension_numbers = #tpu.dot_dimension_numbers<[1], [0], [0], [1], [0, 0, 1, 1], [], []>} : vector<8x4xf32>, vector<4x512xf32>, vector<8x512xf32> -> vector<8x512xf32>
    %19 = arith.addf %14, %18 : vector<8x512xf32>
    %c0_20 = arith.constant 0 : index
    %c17 = arith.constant 17 : index
    %20 = vector.load %arg1[%c0_20, %c17] : memref<4x640xf32, #tpu.memory_space<vmem>>, vector<4x512xf32>
    %c4 = arith.constant 4 : index
    %c0_21 = arith.constant 0 : index
    %c0_22 = arith.constant 0 : index
    %21 = vector.load %arg0[%c4, %c0_21, %c0_22] : memref<9x8x4xf32, #tpu.memory_space<vmem>>, vector<1x8x4xf32>
    %22 = vector.shape_cast %21 : vector<1x8x4xf32> to vector<8x4xf32>
    %cst_23 = arith.constant dense<0.000000e+00> : vector<8x512xf32>
    %23 = tpu.matmul %22, %20, %cst_23 {dimension_numbers = #tpu.dot_dimension_numbers<[1], [0], [0], [1], [0, 0, 1, 1], [], []>} : vector<8x4xf32>, vector<4x512xf32>, vector<8x512xf32> -> vector<8x512xf32>
    %24 = arith.addf %19, %23 : vector<8x512xf32>
    %c0_24 = arith.constant 0 : index
    %c18 = arith.constant 18 : index
    %25 = vector.load %arg1[%c0_24, %c18] : memref<4x640xf32, #tpu.memory_space<vmem>>, vector<4x512xf32>
    %c5 = arith.constant 5 : index
    %c0_25 = arith.constant 0 : index
    %c0_26 = arith.constant 0 : index
    %26 = vector.load %arg0[%c5, %c0_25, %c0_26] : memref<9x8x4xf32, #tpu.memory_space<vmem>>, vector<1x8x4xf32>
    %27 = vector.shape_cast %26 : vector<1x8x4xf32> to vector<8x4xf32>
    %cst_27 = arith.constant dense<0.000000e+00> : vector<8x512xf32>
    %28 = tpu.matmul %27, %25, %cst_27 {dimension_numbers = #tpu.dot_dimension_numbers<[1], [0], [0], [1], [0, 0, 1, 1], [], []>} : vector<8x4xf32>, vector<4x512xf32>, vector<8x512xf32> -> vector<8x512xf32>
    %29 = arith.addf %24, %28 : vector<8x512xf32>
    %c0_28 = arith.constant 0 : index
    %c32 = arith.constant 32 : index
    %30 = vector.load %arg1[%c0_28, %c32] : memref<4x640xf32, #tpu.memory_space<vmem>>, vector<4x512xf32>
    %c6 = arith.constant 6 : index
    %c0_29 = arith.constant 0 : index
    %c0_30 = arith.constant 0 : index
    %31 = vector.load %arg0[%c6, %c0_29, %c0_30] : memref<9x8x4xf32, #tpu.memory_space<vmem>>, vector<1x8x4xf32>
    %32 = vector.shape_cast %31 : vector<1x8x4xf32> to vector<8x4xf32>
    %cst_31 = arith.constant dense<0.000000e+00> : vector<8x512xf32>
    %33 = tpu.matmul %32, %30, %cst_31 {dimension_numbers = #tpu.dot_dimension_numbers<[1], [0], [0], [1], [0, 0, 1, 1], [], []>} : vector<8x4xf32>, vector<4x512xf32>, vector<8x512xf32> -> vector<8x512xf32>
    %34 = arith.addf %29, %33 : vector<8x512xf32>
    %c0_32 = arith.constant 0 : index
    %c33 = arith.constant 33 : index
    %35 = vector.load %arg1[%c0_32, %c33] : memref<4x640xf32, #tpu.memory_space<vmem>>, vector<4x512xf32>
    %c7 = arith.constant 7 : index
    %c0_33 = arith.constant 0 : index
    %c0_34 = arith.constant 0 : index
    %36 = vector.load %arg0[%c7, %c0_33, %c0_34] : memref<9x8x4xf32, #tpu.memory_space<vmem>>, vector<1x8x4xf32>
    %37 = vector.shape_cast %36 : vector<1x8x4xf32> to vector<8x4xf32>
    %cst_35 = arith.constant dense<0.000000e+00> : vector<8x512xf32>
    %38 = tpu.matmul %37, %35, %cst_35 {dimension_numbers = #tpu.dot_dimension_numbers<[1], [0], [0], [1], [0, 0, 1, 1], [], []>} : vector<8x4xf32>, vector<4x512xf32>, vector<8x512xf32> -> vector<8x512xf32>
    %39 = arith.addf %34, %38 : vector<8x512xf32>
    %c0_36 = arith.constant 0 : index
    %c34 = arith.constant 34 : index
    %40 = vector.load %arg1[%c0_36, %c34] : memref<4x640xf32, #tpu.memory_space<vmem>>, vector<4x512xf32>
    %c8 = arith.constant 8 : index
    %c0_37 = arith.constant 0 : index
    %c0_38 = arith.constant 0 : index
    %41 = vector.load %arg0[%c8, %c0_37, %c0_38] : memref<9x8x4xf32, #tpu.memory_space<vmem>>, vector<1x8x4xf32>
    %42 = vector.shape_cast %41 : vector<1x8x4xf32> to vector<8x4xf32>
    %cst_39 = arith.constant dense<0.000000e+00> : vector<8x512xf32>
    %43 = tpu.matmul %42, %40, %cst_39 {dimension_numbers = #tpu.dot_dimension_numbers<[1], [0], [0], [1], [0, 0, 1, 1], [], []>} : vector<8x4xf32>, vector<4x512xf32>, vector<8x512xf32> -> vector<8x512xf32>
    %44 = arith.addf %39, %43 : vector<8x512xf32>
    %45 = vector.broadcast %0 : vector<1x512xf32> to vector<8x512xf32>
    %46 = arith.mulf %44, %45 : vector<8x512xf32>
    %cst_40 = arith.constant dense<0.000000e+00> : vector<8xf32>
    %47 = vector.multi_reduction <add>, %46, %cst_40 [1] : vector<8x512xf32> to vector<8xf32>
    %48 = vector.shape_cast %47 : vector<8xf32> to vector<8x1xf32>
    %cst_41 = arith.constant 0.00255102036 : f32
    %49 = vector.broadcast %cst_41 : f32 to vector<8x1xf32>
    %50 = arith.mulf %48, %49 : vector<8x1xf32>
    %51 = vector.broadcast %50 : vector<8x1xf32> to vector<8x512xf32>
    %52 = arith.subf %44, %51 : vector<8x512xf32>
    %53 = arith.mulf %52, %52 : vector<8x512xf32>
    %54 = vector.broadcast %0 : vector<1x512xf32> to vector<8x512xf32>
    %55 = arith.mulf %53, %54 : vector<8x512xf32>
    %cst_42 = arith.constant dense<0.000000e+00> : vector<8xf32>
    %56 = vector.multi_reduction <add>, %55, %cst_42 [1] : vector<8x512xf32> to vector<8xf32>
    %57 = vector.shape_cast %56 : vector<8xf32> to vector<8x1xf32>
    %cst_43 = arith.constant 0.00255102036 : f32
    %58 = vector.broadcast %cst_43 : f32 to vector<8x1xf32>
    %59 = arith.mulf %57, %58 : vector<8x1xf32>
    %c0_44 = arith.constant 0 : index
    %c0_45 = arith.constant 0 : index
    %60 = vector.load %arg2[%c0_44, %c0_45] : memref<8x1xf32, #tpu.memory_space<vmem>>, vector<8x1xf32>
    %cst_46 = arith.constant 9.99999974E-6 : f32
    %61 = vector.broadcast %cst_46 : f32 to vector<8x1xf32>
    %62 = arith.addf %59, %61 : vector<8x1xf32>
    %63 = math.rsqrt %62 : vector<8x1xf32>
    %64 = arith.mulf %60, %63 : vector<8x1xf32>
    %65 = vector.broadcast %64 : vector<8x1xf32> to vector<8x512xf32>
    %66 = arith.mulf %52, %65 : vector<8x512xf32>
    %c0_47 = arith.constant 0 : index
    %c0_48 = arith.constant 0 : index
    %67 = vector.load %arg3[%c0_47, %c0_48] : memref<8x1xf32, #tpu.memory_space<vmem>>, vector<8x1xf32>
    %68 = vector.broadcast %67 : vector<8x1xf32> to vector<8x512xf32>
    %69 = arith.addf %66, %68 : vector<8x512xf32>
    %cst_49 = arith.constant 5.000000e-01 : f32
    %70 = vector.broadcast %cst_49 : f32 to vector<8x512xf32>
    %71 = arith.cmpf ogt, %69, %70 : vector<8x512xf32>
    %72 = arith.extui %71 : vector<8x512xi1> to vector<8x512xi32>
    %73 = arith.sitofp %72 : vector<8x512xi32> to vector<8x512xf32>
    %c0_50 = arith.constant 0 : index
    %c0_51 = arith.constant 0 : index
    %74 = vector.load %arg5[%c0_50, %c0_51] : memref<8x512xf32, #tpu.memory_space<vmem>>, vector<8x512xf32>
    tpu.vector_store %arg5[%c0_50, %c0_51], %73 {strides = array<i32>} : memref<8x512xf32, #tpu.memory_space<vmem>>, vector<8x512xf32>,
    %cst_52 = arith.constant 2.000000e-01 : f32
    %75 = vector.broadcast %cst_52 : f32 to vector<8x512xf32>
    %76 = arith.mulf %69, %75 : vector<8x512xf32>
    %cst_53 = arith.constant 1.000000e+00 : f32
    %77 = vector.broadcast %cst_53 : f32 to vector<8x512xf32>
    %78 = arith.subf %77, %73 : vector<8x512xf32>
    %79 = arith.mulf %76, %78 : vector<8x512xf32>
    %c0_54 = arith.constant 0 : index
    %c0_55 = arith.constant 0 : index
    %80 = vector.load %arg6[%c0_54, %c0_55] : memref<8x512xf32, #tpu.memory_space<vmem>>, vector<8x512xf32>
    tpu.vector_store %arg6[%c0_54, %c0_55], %79 {strides = array<i32>} : memref<8x512xf32, #tpu.memory_space<vmem>>, vector<8x512xf32>,
    %81 = vector.broadcast %0 : vector<1x512xf32> to vector<8x512xf32>
    %82 = arith.mulf %73, %81 : vector<8x512xf32>
    %83 = vector.shape_cast %82 : vector<8x512xf32> to vector<1x8x512xf32>
    %cst_56 = arith.constant dense<0.000000e+00> : vector<1xf32>
    %84 = vector.multi_reduction <add>, %83, %cst_56 [1, 2] : vector<1x8x512xf32> to vector<1xf32>
    %85 = vector.shape_cast %84 : vector<1xf32> to vector<1x1x1xf32>
    %86 = vector.extract %85[0, 0, 0] : f32 from vector<1x1x1xf32>
    %cst_57 = arith.constant 3.18877544E-4 : f32
    %87 = arith.mulf %86, %cst_57 : f32
    %c0_58 = arith.constant 0 : index
    %c0_59 = arith.constant 0 : index
    %88 = memref.load %arg7[%c0_58, %c0_59] : memref<1x1xf32, #tpu.memory_space<smem>>
    memref.store %87, %arg7[%c0_58, %c0_59] : memref<1x1xf32, #tpu.memory_space<smem>>
    return
  }
}

</mosaic_0001>

<llo_original>
// kernel: snn_2d_aspp_bn_forward.1
$region0: #{snn_2d_aspp_bn_forward.1}
  #allocation0 [shape = 'u32[]', space=smem, size = 0x4, offset = 0x4, fixed_abs, tag = 'smem constant byte address 0x4 - core index']
  #allocation1 [shape = 'u32[72,128]{1,0:T(1,128)}', space=vmem, size = 0x9000, scoped, tag = 'internal scratch']
  %s0 = inlined_call_operand.vmem [shape: f32[9,8,4], index: 0, kind: input, shape index: {}]
  %s1 = inlined_call_operand.vmem [shape: f32[4,640], index: 1, kind: input, shape index: {}]
  %s2 = inlined_call_operand.vmem [shape: f32[8,1], index: 2, kind: input, shape index: {}]
  %s3 = inlined_call_operand.vmem [shape: f32[8,1], index: 3, kind: input, shape index: {}]
  %s4 = inlined_call_operand.vmem [shape: f32[1,512], index: 4, kind: input, shape index: {}]
  %s5 = inlined_call_operand.vmem [shape: f32[8,512], index: 5, kind: output, shape index: {0}]
  %s6 = inlined_call_operand.vmem [shape: f32[8,512], index: 6, kind: output, shape index: {1}]
  %s7 = inlined_call_operand.hbm [shape: f32[1,1], index: 7, kind: output, shape index: {2}]
  %8 = xla_tuple %s5, %s6, %s7
  %s9 = sld [smem:[#allocation0]]
  $region46: #{snn_2d_aspp_bn_forward.1} parent=0
    _
  %s11 = ssub.s32 1, %s9
  %s12 = scalar_select 0, %s11, %s9
  $region1: #{snn_2d_aspp_bn_forward.1} parent=0
    #allocation2 [shape = 'u8[512]{0}', space=smem, size = 0x200, scoped, tag = 'output window, operand 2, single buffered']
    #allocation3 [shape = 's32[1]{0}', space=sflag, size = 0x4, scoped, tag = 'scoped memory for snn_2d_aspp_bn_forward.1']
    %13 = vsyncpa [#allocation3], 0
    // Predicated region
    $region2: #{snn_2d_aspp_bn_forward.1} parent=1 // pred_check
      _
    $region3: #{snn_2d_aspp_bn_forward.1} parent=1 // pred_check_branch
      %15 = sbr.rel (0) target = $region5
    $region4: #{snn_2d_aspp_bn_forward.1} parent=1 // pred_region
      _
    $region5: #{snn_2d_aspp_bn_forward.1} parent=1 // pred_fallthru
      _
    // Predicated region
    $region6: #{snn_2d_aspp_bn_forward.1} parent=1 // pred_check
      _
    $region7: #{snn_2d_aspp_bn_forward.1} parent=1 // pred_check_branch
      %17 = sbr.rel (0) target = $region9
    $region8: #{snn_2d_aspp_bn_forward.1} parent=1 // pred_region
      _
    $region9: #{snn_2d_aspp_bn_forward.1} parent=1 // pred_fallthru
      _
    // Predicated region
    $region10: #{snn_2d_aspp_bn_forward.1} parent=1 // pred_check
      _
    $region11: #{snn_2d_aspp_bn_forward.1} parent=1 // pred_check_branch
      %19 = sbr.rel (0) target = $region13
    $region12: #{snn_2d_aspp_bn_forward.1} parent=1 // pred_region
      _
    $region13: #{snn_2d_aspp_bn_forward.1} parent=1 // pred_fallthru
      _
    // Predicated region
    $region14: #{snn_2d_aspp_bn_forward.1} parent=1 // pred_check
      _
    $region15: #{snn_2d_aspp_bn_forward.1} parent=1 // pred_check_branch
      %21 = sbr.rel (0) target = $region17
    $region16: #{snn_2d_aspp_bn_forward.1} parent=1 // pred_region
      _
    $region17: #{snn_2d_aspp_bn_forward.1} parent=1 // pred_fallthru
      _
    // Predicated region
    $region18: #{snn_2d_aspp_bn_forward.1} parent=1 // pred_check
      _
    $region19: #{snn_2d_aspp_bn_forward.1} parent=1 // pred_check_branch
      %23 = sbr.rel (0) target = $region21
    $region20: #{snn_2d_aspp_bn_forward.1} parent=1 // pred_region
      _
    $region21: #{snn_2d_aspp_bn_forward.1} parent=1 // pred_fallthru
      _
    %v24 = vld [vmem:[%s4] sm:$0xf]
    %v25 = vld [vmem:[%s1] sm:$0xff]
    %v26 = vld [vmem:[%s1 + $0x8] sm:$0xff]
    %v27 = vld [vmem:[%s0] sm:$0xff]
    %v28 = vld [vmem:[%s1] sm:$0xff]
    %v29 = vld [vmem:[%s1 + $0x8] sm:$0xff]
    %v30 = vld [vmem:[%s1 + $0x10] sm:$0xf]
    %s31 = scalar_lea.vmem %s0, 8
    %v32 = vld [vmem:[%s31] sm:$0xff]
    %36 = vst [vmem:[#allocation1] ss:$2 sm:$0xff] %v28
    %s37 = scalar_lea.vmem [#allocation1], 16
    %38 = vst [vmem:[%s37] ss:$2 sm:$0xff] %v29
    %s39 = scalar_lea.vmem [#allocation1], 32
    %40 = vst [vmem:[%s39] ss:$2 sm:$0xff] %v30
    %v41 = vld.sshfl [vmem:[#allocation1] sm:$0xff pattern:$0x75316420]
    %v42 = vld.sshfl [vmem:[#allocation1 + $0x8] sm:$0xff pattern:$0x75316420]
    %v43 = vld.sshfl [vmem:[#allocation1 + $0x10] sm:$0xff pattern:$0x75316420]
    %v44 = vld.sshfl [vmem:[#allocation1 + $0x18] sm:$0xff pattern:$0x75316420]
    %v45 = vld.sshfl [vmem:[#allocation1 + $0x20] sm:$0xff pattern:$0x75316420]
    %46 = vrot.lane.b32.xlu0 %v41, 127
    %v47 = vpop.permute.xlu0 %46
    %48 = vrot.lane.b32.xlu0 %v42, 127
    %v49 = vpop.permute.xlu0 %48
    %50 = vrot.lane.b32.xlu0 %v43, 127
    %v51 = vpop.permute.xlu0 %50
    %52 = vrot.lane.b32.xlu0 %v44, 127
    %v53 = vpop.permute.xlu0 %52
    %54 = vrot.lane.b32.xlu0 %v45, 127
    %v55 = vpop.permute.xlu0 %54
    %vm56 = vcmask 1039360
    %v57 = vsel %vm56, %v47, %v49
    %v58 = vsel %vm56, %v49, %v51
    %v59 = vsel %vm56, %v51, %v53
    %v60 = vsel %vm56, %v53, %v55
    %vm61 = vcmask 31744
    %v63 = vsel %vm61, %v32, 0
    %vm65 = vcmask 1043456
    %v66 = vsel %vm65, %v57, 0
    %v68 = vsel %vm65, %v58, 0
    %v70 = vsel %vm65, %v59, 0
    %v72 = vsel %vm65, %v60, 0
    %74 = vmatpush.msra.mxu0 0.0
    %75 = vmatpush.msra.mxu0 0.0
    %76 = vmatpush.msra.mxu0 0.0
    %77 = vmatpush.msra.mxu0 0.0
    %78 = vmatpush.msra.mxu0 0.0
    %79 = vmatpush.msra.mxu0 0.0
    %80 = vmatpush.msra.mxu0 0.0
    %81 = vmatpush.msra.mxu0 0.0
    %82 = vmatpush.msra.mxu0 0.0
    %83 = vmatpush.msra.mxu0 0.0
    %84 = vmatpush.msra.mxu0 0.0
    %85 = vmatpush.msra.mxu0 0.0
    %86 = vmatpush.msra.mxu0 0.0
    %87 = vmatpush.msra.mxu0 0.0
    %88 = vmatpush.msra.mxu0 0.0
    %89 = vmatpush.msra.mxu0 %v66
    %90 = vmatmul.f32.gmra.mxu0 %v63
    %v91 = vpop.f32.mrf.mxu0
    %v92 = vadd.f32 0.0, %v91
    %93 = vdwg.mxu0
    %94 = vmatpush.msra.mxu0 0.0
    %95 = vmatpush.msra.mxu0 0.0
    %96 = vmatpush.msra.mxu0 0.0
    %97 = vmatpush.msra.mxu0 0.0
    %98 = vmatpush.msra.mxu0 0.0
    %99 = vmatpush.msra.mxu0 0.0
    %100 = vmatpush.msra.mxu0 0.0
    %101 = vmatpush.msra.mxu0 0.0
    %102 = vmatpush.msra.mxu0 0.0
    %103 = vmatpush.msra.mxu0 0.0
    %104 = vmatpush.msra.mxu0 0.0
    %105 = vmatpush.msra.mxu0 0.0
    %106 = vmatpush.msra.mxu0 0.0
    %107 = vmatpush.msra.mxu0 0.0
    %108 = vmatpush.msra.mxu0 0.0
    %109 = vmatpush.msra.mxu0 %v68
    %110 = vmatmul.f32.gmra.mxu0 %v63
    %v111 = vpop.f32.mrf.mxu0
    %v112 = vadd.f32 0.0, %v111
    %113 = vdwg.mxu0
    %114 = vmatpush.msra.mxu0 0.0
    %115 = vmatpush.msra.mxu0 0.0
    %116 = vmatpush.msra.mxu0 0.0
    %117 = vmatpush.msra.mxu0 0.0
    %118 = vmatpush.msra.mxu0 0.0
    %119 = vmatpush.msra.mxu0 0.0
    %120 = vmatpush.msra.mxu0 0.0
    %121 = vmatpush.msra.mxu0 0.0
    %122 = vmatpush.msra.mxu0 0.0
    %123 = vmatpush.msra.mxu0 0.0
    %124 = vmatpush.msra.mxu0 0.0
    %125 = vmatpush.msra.mxu0 0.0
    %126 = vmatpush.msra.mxu0 0.0
    %127 = vmatpush.msra.mxu0 0.0
    %128 = vmatpush.msra.mxu0 0.0
    %129 = vmatpush.msra.mxu0 %v70
    %130 = vmatmul.f32.gmra.mxu0 %v63
    %v131 = vpop.f32.mrf.mxu0
    %v132 = vadd.f32 0.0, %v131
    %133 = vdwg.mxu0
    %134 = vmatpush.msra.mxu0 0.0
    %135 = vmatpush.msra.mxu0 0.0
    %136 = vmatpush.msra.mxu0 0.0
    %137 = vmatpush.msra.mxu0 0.0
    %138 = vmatpush.msra.mxu0 0.0
    %139 = vmatpush.msra.mxu0 0.0
    %140 = vmatpush.msra.mxu0 0.0
    %141 = vmatpush.msra.mxu0 0.0
    %142 = vmatpush.msra.mxu0 0.0
    %143 = vmatpush.msra.mxu0 0.0
    %144 = vmatpush.msra.mxu0 0.0
    %145 = vmatpush.msra.mxu0 0.0
    %146 = vmatpush.msra.mxu0 0.0
    %147 = vmatpush.msra.mxu0 0.0
    %148 = vmatpush.msra.mxu0 0.0
    %149 = vmatpush.msra.mxu0 %v72
    %150 = vmatmul.f32.gmra.mxu0 %v63
    %v151 = vpop.f32.mrf.mxu0
    %v152 = vadd.f32 0.0, %v151
    %153 = vdwg.mxu0
    %156 = vst [vmem:[#allocation1] ss:$2 sm:$0xff] %v25
    %s157 = scalar_lea.vmem [#allocation1], 16
    %158 = vst [vmem:[%s157] ss:$2 sm:$0xff] %v26
    %v159 = vld.sshfl [vmem:[#allocation1] sm:$0xff pattern:$0x75316420]
    %v160 = vld.sshfl [vmem:[#allocation1 + $0x8] sm:$0xff pattern:$0x75316420]
    %v161 = vld.sshfl [vmem:[#allocation1 + $0x10] sm:$0xff pattern:$0x75316420]
    %v162 = vld.sshfl [vmem:[#allocation1 + $0x18] sm:$0xff pattern:$0x75316420]
    %v164 = vsel %vm61, %v27, 0
    %v166 = vsel %vm65, %v159, 0
    %v168 = vsel %vm65, %v160, 0
    %v170 = vsel %vm65, %v161, 0
    %v172 = vsel %vm65, %v162, 0
    %174 = vmatpush.msra.mxu0 0.0
    %175 = vmatpush.msra.mxu0 0.0
    %176 = vmatpush.msra.mxu0 0.0
    %177 = vmatpush.msra.mxu0 0.0
    %178 = vmatpush.msra.mxu0 0.0
    %179 = vmatpush.msra.mxu0 0.0
    %180 = vmatpush.msra.mxu0 0.0
    %181 = vmatpush.msra.mxu0 0.0
    %182 = vmatpush.msra.mxu0 0.0
    %183 = vmatpush.msra.mxu0 0.0
    %184 = vmatpush.msra.mxu0 0.0
    %185 = vmatpush.msra.mxu0 0.0
    %186 = vmatpush.msra.mxu0 0.0
    %187 = vmatpush.msra.mxu0 0.0
    %188 = vmatpush.msra.mxu0 0.0
    %189 = vmatpush.msra.mxu0 %v166
    %190 = vmatmul.f32.gmra.mxu0 %v164
    %v191 = vpop.f32.mrf.mxu0
    %v192 = vadd.f32 %v92, %v191
    %193 = vdwg.mxu0
    %194 = vmatpush.msra.mxu0 0.0
    %195 = vmatpush.msra.mxu0 0.0
    %196 = vmatpush.msra.mxu0 0.0
    %197 = vmatpush.msra.mxu0 0.0
    %198 = vmatpush.msra.mxu0 0.0
    %199 = vmatpush.msra.mxu0 0.0
    %200 = vmatpush.msra.mxu0 0.0
    %201 = vmatpush.msra.mxu0 0.0
    %202 = vmatpush.msra.mxu0 0.0
    %203 = vmatpush.msra.mxu0 0.0
    %204 = vmatpush.msra.mxu0 0.0
    %205 = vmatpush.msra.mxu0 0.0
    %206 = vmatpush.msra.mxu0 0.0
    %207 = vmatpush.msra.mxu0 0.0
    %208 = vmatpush.msra.mxu0 0.0
    %209 = vmatpush.msra.mxu0 %v168
    %210 = vmatmul.f32.gmra.mxu0 %v164
    %v211 = vpop.f32.mrf.mxu0
    %v212 = vadd.f32 %v112, %v211
    %213 = vdwg.mxu0
    %214 = vmatpush.msra.mxu0 0.0
    %215 = vmatpush.msra.mxu0 0.0
    %216 = vmatpush.msra.mxu0 0.0
    %217 = vmatpush.msra.mxu0 0.0
    %218 = vmatpush.msra.mxu0 0.0
    %219 = vmatpush.msra.mxu0 0.0
    %220 = vmatpush.msra.mxu0 0.0
    %221 = vmatpush.msra.mxu0 0.0
    %222 = vmatpush.msra.mxu0 0.0
    %223 = vmatpush.msra.mxu0 0.0
    %224 = vmatpush.msra.mxu0 0.0
    %225 = vmatpush.msra.mxu0 0.0
    %226 = vmatpush.msra.mxu0 0.0
    %227 = vmatpush.msra.mxu0 0.0
    %228 = vmatpush.msra.mxu0 0.0
    %229 = vmatpush.msra.mxu0 %v170
    %230 = vmatmul.f32.gmra.mxu0 %v164
    %v231 = vpop.f32.mrf.mxu0
    %v232 = vadd.f32 %v132, %v231
    %233 = vdwg.mxu0
    %234 = vmatpush.msra.mxu0 0.0
    %235 = vmatpush.msra.mxu0 0.0
    %236 = vmatpush.msra.mxu0 0.0
    %237 = vmatpush.msra.mxu0 0.0
    %238 = vmatpush.msra.mxu0 0.0
    %239 = vmatpush.msra.mxu0 0.0
    %240 = vmatpush.msra.mxu0 0.0
    %241 = vmatpush.msra.mxu0 0.0
    %242 = vmatpush.msra.mxu0 0.0
    %243 = vmatpush.msra.mxu0 0.0
    %244 = vmatpush.msra.mxu0 0.0
    %245 = vmatpush.msra.mxu0 0.0
    %246 = vmatpush.msra.mxu0 0.0
    %247 = vmatpush.msra.mxu0 0.0
    %248 = vmatpush.msra.mxu0 0.0
    %249 = vmatpush.msra.mxu0 %v172
    %250 = vmatmul.f32.gmra.mxu0 %v164
    %v251 = vpop.f32.mrf.mxu0
    %v252 = vadd.f32 %v152, %v251
    %253 = vdwg.mxu0
    %v254 = vld [vmem:[%s1] sm:$0xff]
    %v255 = vld [vmem:[%s1 + $0x8] sm:$0xff]
    %v256 = vld [vmem:[%s1 + $0x10] sm:$0xf]
    %s257 = scalar_lea.vmem %s0, 16
    %v258 = vld [vmem:[%s257] sm:$0xff]
    %262 = vst [vmem:[#allocation1] ss:$2 sm:$0xff] %v254
    %s263 = scalar_lea.vmem [#allocation1], 16
    %264 = vst [vmem:[%s263] ss:$2 sm:$0xff] %v255
    %s265 = scalar_lea.vmem [#allocation1], 32
    %266 = vst [vmem:[%s265] ss:$2 sm:$0xff] %v256
    %v267 = vld.sshfl [vmem:[#allocation1] sm:$0xff pattern:$0x75316420]
    %v268 = vld.sshfl [vmem:[#allocation1 + $0x8] sm:$0xff pattern:$0x75316420]
    %v269 = vld.sshfl [vmem:[#allocation1 + $0x10] sm:$0xff pattern:$0x75316420]
    %v270 = vld.sshfl [vmem:[#allocation1 + $0x18] sm:$0xff pattern:$0x75316420]
    %v271 = vld.sshfl [vmem:[#allocation1 + $0x20] sm:$0xff pattern:$0x75316420]
    %272 = vrot.lane.b32.xlu0 %v267, 126
    %v273 = vpop.permute.xlu0 %272
    %274 = vrot.lane.b32.xlu0 %v268, 126
    %v275 = vpop.permute.xlu0 %274
    %276 = vrot.lane.b32.xlu0 %v269, 126
    %v277 = vpop.permute.xlu0 %276
    %278 = vrot.lane.b32.xlu0 %v270, 126
    %v279 = vpop.permute.xlu0 %278
    %280 = vrot.lane.b32.xlu0 %v271, 126
    %v281 = vpop.permute.xlu0 %280
    %vm282 = vcmask 1031168
    %v283 = vsel %vm282, %v273, %v275
    %v284 = vsel %vm282, %v275, %v277
    %v285 = vsel %vm282, %v277, %v279
    %v286 = vsel %vm282, %v279, %v281
    %v288 = vsel %vm61, %v258, 0
    %v290 = vsel %vm65, %v283, 0
    %v292 = vsel %vm65, %v284, 0
    %v294 = vsel %vm65, %v285, 0
    %v296 = vsel %vm65, %v286, 0
    %298 = vmatpush.msra.mxu0 0.0
    %299 = vmatpush.msra.mxu0 0.0
    %300 = vmatpush.msra.mxu0 0.0
    %301 = vmatpush.msra.mxu0 0.0
    %302 = vmatpush.msra.mxu0 0.0
    %303 = vmatpush.msra.mxu0 0.0
    %304 = vmatpush.msra.mxu0 0.0
    %305 = vmatpush.msra.mxu0 0.0
    %306 = vmatpush.msra.mxu0 0.0
    %307 = vmatpush.msra.mxu0 0.0
    %308 = vmatpush.msra.mxu0 0.0
    %309 = vmatpush.msra.mxu0 0.0
    %310 = vmatpush.msra.mxu0 0.0
    %311 = vmatpush.msra.mxu0 0.0
    %312 = vmatpush.msra.mxu0 0.0
    %313 = vmatpush.msra.mxu0 %v290
    %314 = vmatmul.f32.gmra.mxu0 %v288
    %v315 = vpop.f32.mrf.mxu0
    %v316 = vadd.f32 0.0, %v315
    %317 = vdwg.mxu0
    %318 = vmatpush.msra.mxu0 0.0
    %319 = vmatpush.msra.mxu0 0.0
    %320 = vmatpush.msra.mxu0 0.0
    %321 = vmatpush.msra.mxu0 0.0
    %322 = vmatpush.msra.mxu0 0.0
    %323 = vmatpush.msra.mxu0 0.0
    %324 = vmatpush.msra.mxu0 0.0
    %325 = vmatpush.msra.mxu0 0.0
    %326 = vmatpush.msra.mxu0 0.0
    %327 = vmatpush.msra.mxu0 0.0
    %328 = vmatpush.msra.mxu0 0.0
    %329 = vmatpush.msra.mxu0 0.0
    %330 = vmatpush.msra.mxu0 0.0
    %331 = vmatpush.msra.mxu0 0.0
    %332 = vmatpush.msra.mxu0 0.0
    %333 = vmatpush.msra.mxu0 %v292
    %334 = vmatmul.f32.gmra.mxu0 %v288
    %v335 = vpop.f32.mrf.mxu0
    %v336 = vadd.f32 0.0, %v335
    %337 = vdwg.mxu0
    %338 = vmatpush.msra.mxu0 0.0
    %339 = vmatpush.msra.mxu0 0.0
    %340 = vmatpush.msra.mxu0 0.0
    %341 = vmatpush.msra.mxu0 0.0
    %342 = vmatpush.msra.mxu0 0.0
    %343 = vmatpush.msra.mxu0 0.0
    %344 = vmatpush.msra.mxu0 0.0
    %345 = vmatpush.msra.mxu0 0.0
    %346 = vmatpush.msra.mxu0 0.0
    %347 = vmatpush.msra.mxu0 0.0
    %348 = vmatpush.msra.mxu0 0.0
    %349 = vmatpush.msra.mxu0 0.0
    %350 = vmatpush.msra.mxu0 0.0
    %351 = vmatpush.msra.mxu0 0.0
    %352 = vmatpush.msra.mxu0 0.0
    %353 = vmatpush.msra.mxu0 %v294
    %354 = vmatmul.f32.gmra.mxu0 %v288
    %v355 = vpop.f32.mrf.mxu0
    %v356 = vadd.f32 0.0, %v355
    %357 = vdwg.mxu0
    %358 = vmatpush.msra.mxu0 0.0
    %359 = vmatpush.msra.mxu0 0.0
    %360 = vmatpush.msra.mxu0 0.0
    %361 = vmatpush.msra.mxu0 0.0
    %362 = vmatpush.msra.mxu0 0.0
    %363 = vmatpush.msra.mxu0 0.0
    %364 = vmatpush.msra.mxu0 0.0
    %365 = vmatpush.msra.mxu0 0.0
    %366 = vmatpush.msra.mxu0 0.0
    %367 = vmatpush.msra.mxu0 0.0
    %368 = vmatpush.msra.mxu0 0.0
    %369 = vmatpush.msra.mxu0 0.0
    %370 = vmatpush.msra.mxu0 0.0
    %371 = vmatpush.msra.mxu0 0.0
    %372 = vmatpush.msra.mxu0 0.0
    %373 = vmatpush.msra.mxu0 %v296
    %374 = vmatmul.f32.gmra.mxu0 %v288
    %v375 = vpop.f32.mrf.mxu0
    %v376 = vadd.f32 0.0, %v375
    %377 = vdwg.mxu0
    %v378 = vadd.f32 %v192, %v316
    %v379 = vadd.f32 %v212, %v336
    %v380 = vadd.f32 %v232, %v356
    %v381 = vadd.f32 %v252, %v376
    %v382 = vld [vmem:[%s1] sm:$0xff]
    %v383 = vld [vmem:[%s1 + $0x8] sm:$0xff]
    %v384 = vld [vmem:[%s1 + $0x10] sm:$0xf]
    %s385 = scalar_lea.vmem %s0, 24
    %v386 = vld [vmem:[%s385] sm:$0xff]
    %390 = vst [vmem:[#allocation1] ss:$2 sm:$0xff] %v382
    %s391 = scalar_lea.vmem [#allocation1], 16
    %392 = vst [vmem:[%s391] ss:$2 sm:$0xff] %v383
    %s393 = scalar_lea.vmem [#allocation1], 32
    %394 = vst [vmem:[%s393] ss:$2 sm:$0xff] %v384
    %v395 = vld.sshfl [vmem:[#allocation1] sm:$0xff pattern:$0x75316420]
    %v396 = vld.sshfl [vmem:[#allocation1 + $0x8] sm:$0xff pattern:$0x75316420]
    %v397 = vld.sshfl [vmem:[#allocation1 + $0x10] sm:$0xff pattern:$0x75316420]
    %v398 = vld.sshfl [vmem:[#allocation1 + $0x18] sm:$0xff pattern:$0x75316420]
    %v399 = vld.sshfl [vmem:[#allocation1 + $0x20] sm:$0xff pattern:$0x75316420]
    %400 = vrot.lane.b32.xlu0 %v395, 112
    %v401 = vpop.permute.xlu0 %400
    %402 = vrot.lane.b32.xlu0 %v396, 112
    %v403 = vpop.permute.xlu0 %402
    %404 = vrot.lane.b32.xlu0 %v397, 112
    %v405 = vpop.permute.xlu0 %404
    %406 = vrot.lane.b32.xlu0 %v398, 112
    %v407 = vpop.permute.xlu0 %406
    %408 = vrot.lane.b32.xlu0 %v399, 112
    %v409 = vpop.permute.xlu0 %408
    %vm410 = vcmask 916480
    %v411 = vsel %vm410, %v401, %v403
    %v412 = vsel %vm410, %v403, %v405
    %v413 = vsel %vm410, %v405, %v407
    %v414 = vsel %vm410, %v407, %v409
    %v416 = vsel %vm61, %v386, 0
    %v418 = vsel %vm65, %v411, 0
    %v420 = vsel %vm65, %v412, 0
    %v422 = vsel %vm65, %v413, 0
    %v424 = vsel %vm65, %v414, 0
    %426 = vmatpush.msra.mxu0 0.0
    %427 = vmatpush.msra.mxu0 0.0
    %428 = vmatpush.msra.mxu0 0.0
    %429 = vmatpush.msra.mxu0 0.0
    %430 = vmatpush.msra.mxu0 0.0
    %431 = vmatpush.msra.mxu0 0.0
    %432 = vmatpush.msra.mxu0 0.0
    %433 = vmatpush.msra.mxu0 0.0
    %434 = vmatpush.msra.mxu0 0.0
    %435 = vmatpush.msra.mxu0 0.0
    %436 = vmatpush.msra.mxu0 0.0
    %437 = vmatpush.msra.mxu0 0.0
    %438 = vmatpush.msra.mxu0 0.0
    %439 = vmatpush.msra.mxu0 0.0
    %440 = vmatpush.msra.mxu0 0.0
    %441 = vmatpush.msra.mxu0 %v418
    %442 = vmatmul.f32.gmra.mxu0 %v416
    %v443 = vpop.f32.mrf.mxu0
    %v444 = vadd.f32 0.0, %v443
    %445 = vdwg.mxu0
    %446 = vmatpush.msra.mxu0 0.0
    %447 = vmatpush.msra.mxu0 0.0
    %448 = vmatpush.msra.mxu0 0.0
    %449 = vmatpush.msra.mxu0 0.0
    %450 = vmatpush.msra.mxu0 0.0
    %451 = vmatpush.msra.mxu0 0.0
    %452 = vmatpush.msra.mxu0 0.0
    %453 = vmatpush.msra.mxu0 0.0
    %454 = vmatpush.msra.mxu0 0.0
    %455 = vmatpush.msra.mxu0 0.0
    %456 = vmatpush.msra.mxu0 0.0
    %457 = vmatpush.msra.mxu0 0.0
    %458 = vmatpush.msra.mxu0 0.0
    %459 = vmatpush.msra.mxu0 0.0
    %460 = vmatpush.msra.mxu0 0.0
    %461 = vmatpush.msra.mxu0 %v420
    %462 = vmatmul.f32.gmra.mxu0 %v416
    %v463 = vpop.f32.mrf.mxu0
    %v464 = vadd.f32 0.0, %v463
    %465 = vdwg.mxu0
    %466 = vmatpush.msra.mxu0 0.0
    %467 = vmatpush.msra.mxu0 0.0
    %468 = vmatpush.msra.mxu0 0.0
    %469 = vmatpush.msra.mxu0 0.0
    %470 = vmatpush.msra.mxu0 0.0
    %471 = vmatpush.msra.mxu0 0.0
    %472 = vmatpush.msra.mxu0 0.0
    %473 = vmatpush.msra.mxu0 0.0
    %474 = vmatpush.msra.mxu0 0.0
    %475 = vmatpush.msra.mxu0 0.0
    %476 = vmatpush.msra.mxu0 0.0
    %477 = vmatpush.msra.mxu0 0.0
    %478 = vmatpush.msra.mxu0 0.0
    %479 = vmatpush.msra.mxu0 0.0
    %480 = vmatpush.msra.mxu0 0.0
    %481 = vmatpush.msra.mxu0 %v422
    %482 = vmatmul.f32.gmra.mxu0 %v416
    %v483 = vpop.f32.mrf.mxu0
    %v484 = vadd.f32 0.0, %v483
    %485 = vdwg.mxu0
    %486 = vmatpush.msra.mxu0 0.0
    %487 = vmatpush.msra.mxu0 0.0
    %488 = vmatpush.msra.mxu0 0.0
    %489 = vmatpush.msra.mxu0 0.0
    %490 = vmatpush.msra.mxu0 0.0
    %491 = vmatpush.msra.mxu0 0.0
    %492 = vmatpush.msra.mxu0 0.0
    %493 = vmatpush.msra.mxu0 0.0
    %494 = vmatpush.msra.mxu0 0.0
    %495 = vmatpush.msra.mxu0 0.0
    %496 = vmatpush.msra.mxu0 0.0
    %497 = vmatpush.msra.mxu0 0.0
    %498 = vmatpush.msra.mxu0 0.0
    %499 = vmatpush.msra.mxu0 0.0
    %500 = vmatpush.msra.mxu0 0.0
    %501 = vmatpush.msra.mxu0 %v424
    %502 = vmatmul.f32.gmra.mxu0 %v416
    %v503 = vpop.f32.mrf.mxu0
    %v504 = vadd.f32 0.0, %v503
    %505 = vdwg.mxu0
    %v506 = vadd.f32 %v378, %v444
    %v507 = vadd.f32 %v379, %v464
    %v508 = vadd.f32 %v380, %v484
    %v509 = vadd.f32 %v381, %v504
    %v510 = vld [vmem:[%s1] sm:$0xff]
    %v511 = vld [vmem:[%s1 + $0x8] sm:$0xff]
    %v512 = vld [vmem:[%s1 + $0x10] sm:$0xf]
    %s513 = scalar_lea.vmem %s0, 32
    %v514 = vld [vmem:[%s513] sm:$0xff]
    %518 = vst [vmem:[#allocation1] ss:$2 sm:$0xff] %v510
    %s519 = scalar_lea.vmem [#allocation1], 16
    %520 = vst [vmem:[%s519] ss:$2 sm:$0xff] %v511
    %s521 = scalar_lea.vmem [#allocation1], 32
    %522 = vst [vmem:[%s521] ss:$2 sm:$0xff] %v512
    %v523 = vld.sshfl [vmem:[#allocation1] sm:$0xff pattern:$0x75316420]
    %v524 = vld.sshfl [vmem:[#allocation1 + $0x8] sm:$0xff pattern:$0x75316420]
    %v525 = vld.sshfl [vmem:[#allocation1 + $0x10] sm:$0xff pattern:$0x75316420]
    %v526 = vld.sshfl [vmem:[#allocation1 + $0x18] sm:$0xff pattern:$0x75316420]
    %v527 = vld.sshfl [vmem:[#allocation1 + $0x20] sm:$0xff pattern:$0x75316420]
    %528 = vrot.lane.b32.xlu0 %v523, 111
    %v529 = vpop.permute.xlu0 %528
    %530 = vrot.lane.b32.xlu0 %v524, 111
    %v531 = vpop.permute.xlu0 %530
    %532 = vrot.lane.b32.xlu0 %v525, 111
    %v533 = vpop.permute.xlu0 %532
    %534 = vrot.lane.b32.xlu0 %v526, 111
    %v535 = vpop.permute.xlu0 %534
    %536 = vrot.lane.b32.xlu0 %v527, 111
    %v537 = vpop.permute.xlu0 %536
    %vm538 = vcmask 908288
    %v539 = vsel %vm538, %v529, %v531
    %v540 = vsel %vm538, %v531, %v533
    %v541 = vsel %vm538, %v533, %v535
    %v542 = vsel %vm538, %v535, %v537
    %v544 = vsel %vm61, %v514, 0
    %v546 = vsel %vm65, %v539, 0
    %v548 = vsel %vm65, %v540, 0
    %v550 = vsel %vm65, %v541, 0
    %v552 = vsel %vm65, %v542, 0
    %554 = vmatpush.msra.mxu0 0.0
    %555 = vmatpush.msra.mxu0 0.0
    %556 = vmatpush.msra.mxu0 0.0
    %557 = vmatpush.msra.mxu0 0.0
    %558 = vmatpush.msra.mxu0 0.0
    %559 = vmatpush.msra.mxu0 0.0
    %560 = vmatpush.msra.mxu0 0.0
    %561 = vmatpush.msra.mxu0 0.0
    %562 = vmatpush.msra.mxu0 0.0
    %563 = vmatpush.msra.mxu0 0.0
    %564 = vmatpush.msra.mxu0 0.0
    %565 = vmatpush.msra.mxu0 0.0
    %566 = vmatpush.msra.mxu0 0.0
    %567 = vmatpush.msra.mxu0 0.0
    %568 = vmatpush.msra.mxu0 0.0
    %569 = vmatpush.msra.mxu0 %v546
    %570 = vmatmul.f32.gmra.mxu0 %v544
    %v571 = vpop.f32.mrf.mxu0
    %v572 = vadd.f32 0.0, %v571
    %573 = vdwg.mxu0
    %574 = vmatpush.msra.mxu0 0.0
    %575 = vmatpush.msra.mxu0 0.0
    %576 = vmatpush.msra.mxu0 0.0
    %577 = vmatpush.msra.mxu0 0.0
    %578 = vmatpush.msra.mxu0 0.0
    %579 = vmatpush.msra.mxu0 0.0
    %580 = vmatpush.msra.mxu0 0.0
    %581 = vmatpush.msra.mxu0 0.0
    %582 = vmatpush.msra.mxu0 0.0
    %583 = vmatpush.msra.mxu0 0.0
    %584 = vmatpush.msra.mxu0 0.0
    %585 = vmatpush.msra.mxu0 0.0
    %586 = vmatpush.msra.mxu0 0.0
    %587 = vmatpush.msra.mxu0 0.0
    %588 = vmatpush.msra.mxu0 0.0
    %589 = vmatpush.msra.mxu0 %v548
    %590 = vmatmul.f32.gmra.mxu0 %v544
    %v591 = vpop.f32.mrf.mxu0
    %v592 = vadd.f32 0.0, %v591
    %593 = vdwg.mxu0
    %594 = vmatpush.msra.mxu0 0.0
    %595 = vmatpush.msra.mxu0 0.0
    %596 = vmatpush.msra.mxu0 0.0
    %597 = vmatpush.msra.mxu0 0.0
    %598 = vmatpush.msra.mxu0 0.0
    %599 = vmatpush.msra.mxu0 0.0
    %600 = vmatpush.msra.mxu0 0.0
    %601 = vmatpush.msra.mxu0 0.0
    %602 = vmatpush.msra.mxu0 0.0
    %603 = vmatpush.msra.mxu0 0.0
    %604 = vmatpush.msra.mxu0 0.0
    %605 = vmatpush.msra.mxu0 0.0
    %606 = vmatpush.msra.mxu0 0.0
    %607 = vmatpush.msra.mxu0 0.0
    %608 = vmatpush.msra.mxu0 0.0
    %609 = vmatpush.msra.mxu0 %v550
    %610 = vmatmul.f32.gmra.mxu0 %v544
    %v611 = vpop.f32.mrf.mxu0
    %v612 = vadd.f32 0.0, %v611
    %613 = vdwg.mxu0
    %614 = vmatpush.msra.mxu0 0.0
    %615 = vmatpush.msra.mxu0 0.0
    %616 = vmatpush.msra.mxu0 0.0
    %617 = vmatpush.msra.mxu0 0.0
    %618 = vmatpush.msra.mxu0 0.0
    %619 = vmatpush.msra.mxu0 0.0
    %620 = vmatpush.msra.mxu0 0.0
    %621 = vmatpush.msra.mxu0 0.0
    %622 = vmatpush.msra.mxu0 0.0
    %623 = vmatpush.msra.mxu0 0.0
    %624 = vmatpush.msra.mxu0 0.0
    %625 = vmatpush.msra.mxu0 0.0
    %626 = vmatpush.msra.mxu0 0.0
    %627 = vmatpush.msra.mxu0 0.0
    %628 = vmatpush.msra.mxu0 0.0
    %629 = vmatpush.msra.mxu0 %v552
    %630 = vmatmul.f32.gmra.mxu0 %v544
    %v631 = vpop.f32.mrf.mxu0
    %v632 = vadd.f32 0.0, %v631
    %633 = vdwg.mxu0
    %v634 = vadd.f32 %v506, %v572
    %v635 = vadd.f32 %v507, %v592
    %v636 = vadd.f32 %v508, %v612
    %v637 = vadd.f32 %v509, %v632
    %v638 = vld [vmem:[%s1] sm:$0xff]
    %v639 = vld [vmem:[%s1 + $0x8] sm:$0xff]
    %v640 = vld [vmem:[%s1 + $0x10] sm:$0xf]
    %s641 = scalar_lea.vmem %s0, 40
    %v642 = vld [vmem:[%s641] sm:$0xff]
    %646 = vst [vmem:[#allocation1] ss:$2 sm:$0xff] %v638
    %s647 = scalar_lea.vmem [#allocation1], 16
    %648 = vst [vmem:[%s647] ss:$2 sm:$0xff] %v639
    %s649 = scalar_lea.vmem [#allocation1], 32
    %650 = vst [vmem:[%s649] ss:$2 sm:$0xff] %v640
    %v651 = vld.sshfl [vmem:[#allocation1] sm:$0xff pattern:$0x75316420]
    %v652 = vld.sshfl [vmem:[#allocation1 + $0x8] sm:$0xff pattern:$0x75316420]
    %v653 = vld.sshfl [vmem:[#allocation1 + $0x10] sm:$0xff pattern:$0x75316420]
    %v654 = vld.sshfl [vmem:[#allocation1 + $0x18] sm:$0xff pattern:$0x75316420]
    %v655 = vld.sshfl [vmem:[#allocation1 + $0x20] sm:$0xff pattern:$0x75316420]
    %656 = vrot.lane.b32.xlu0 %v651, 110
    %v657 = vpop.permute.xlu0 %656
    %658 = vrot.lane.b32.xlu0 %v652, 110
    %v659 = vpop.permute.xlu0 %658
    %660 = vrot.lane.b32.xlu0 %v653, 110
    %v661 = vpop.permute.xlu0 %660
    %662 = vrot.lane.b32.xlu0 %v654, 110
    %v663 = vpop.permute.xlu0 %662
    %664 = vrot.lane.b32.xlu0 %v655, 110
    %v665 = vpop.permute.xlu0 %664
    %vm666 = vcmask 900096
    %v667 = vsel %vm666, %v657, %v659
    %v668 = vsel %vm666, %v659, %v661
    %v669 = vsel %vm666, %v661, %v663
    %v670 = vsel %vm666, %v663, %v665
    %v672 = vsel %vm61, %v642, 0
    %v674 = vsel %vm65, %v667, 0
    %v676 = vsel %vm65, %v668, 0
    %v678 = vsel %vm65, %v669, 0
    %v680 = vsel %vm65, %v670, 0
    %682 = vmatpush.msra.mxu0 0.0
    %683 = vmatpush.msra.mxu0 0.0
    %684 = vmatpush.msra.mxu0 0.0
    %685 = vmatpush.msra.mxu0 0.0
    %686 = vmatpush.msra.mxu0 0.0
    %687 = vmatpush.msra.mxu0 0.0
    %688 = vmatpush.msra.mxu0 0.0
    %689 = vmatpush.msra.mxu0 0.0
    %690 = vmatpush.msra.mxu0 0.0
    %691 = vmatpush.msra.mxu0 0.0
    %692 = vmatpush.msra.mxu0 0.0
    %693 = vmatpush.msra.mxu0 0.0
    %694 = vmatpush.msra.mxu0 0.0
    %695 = vmatpush.msra.mxu0 0.0
    %696 = vmatpush.msra.mxu0 0.0
    %697 = vmatpush.msra.mxu0 %v674
    %698 = vmatmul.f32.gmra.mxu0 %v672
    %v699 = vpop.f32.mrf.mxu0
    %v700 = vadd.f32 0.0, %v699
    %701 = vdwg.mxu0
    %702 = vmatpush.msra.mxu0 0.0
    %703 = vmatpush.msra.mxu0 0.0
    %704 = vmatpush.msra.mxu0 0.0
    %705 = vmatpush.msra.mxu0 0.0
    %706 = vmatpush.msra.mxu0 0.0
    %707 = vmatpush.msra.mxu0 0.0
    %708 = vmatpush.msra.mxu0 0.0
    %709 = vmatpush.msra.mxu0 0.0
    %710 = vmatpush.msra.mxu0 0.0
    %711 = vmatpush.msra.mxu0 0.0
    %712 = vmatpush.msra.mxu0 0.0
    %713 = vmatpush.msra.mxu0 0.0
    %714 = vmatpush.msra.mxu0 0.0
    %715 = vmatpush.msra.mxu0 0.0
    %716 = vmatpush.msra.mxu0 0.0
    %717 = vmatpush.msra.mxu0 %v676
    %718 = vmatmul.f32.gmra.mxu0 %v672
    %v719 = vpop.f32.mrf.mxu0
    %v720 = vadd.f32 0.0, %v719
    %721 = vdwg.mxu0
    %722 = vmatpush.msra.mxu0 0.0
    %723 = vmatpush.msra.mxu0 0.0
    %724 = vmatpush.msra.mxu0 0.0
    %725 = vmatpush.msra.mxu0 0.0
    %726 = vmatpush.msra.mxu0 0.0
    %727 = vmatpush.msra.mxu0 0.0
    %728 = vmatpush.msra.mxu0 0.0
    %729 = vmatpush.msra.mxu0 0.0
    %730 = vmatpush.msra.mxu0 0.0
    %731 = vmatpush.msra.mxu0 0.0
    %732 = vmatpush.msra.mxu0 0.0
    %733 = vmatpush.msra.mxu0 0.0
    %734 = vmatpush.msra.mxu0 0.0
    %735 = vmatpush.msra.mxu0 0.0
    %736 = vmatpush.msra.mxu0 0.0
    %737 = vmatpush.msra.mxu0 %v678
    %738 = vmatmul.f32.gmra.mxu0 %v672
    %v739 = vpop.f32.mrf.mxu0
    %v740 = vadd.f32 0.0, %v739
    %741 = vdwg.mxu0
    %742 = vmatpush.msra.mxu0 0.0
    %743 = vmatpush.msra.mxu0 0.0
    %744 = vmatpush.msra.mxu0 0.0
    %745 = vmatpush.msra.mxu0 0.0
    %746 = vmatpush.msra.mxu0 0.0
    %747 = vmatpush.msra.mxu0 0.0
    %748 = vmatpush.msra.mxu0 0.0
    %749 = vmatpush.msra.mxu0 0.0
    %750 = vmatpush.msra.mxu0 0.0
    %751 = vmatpush.msra.mxu0 0.0
    %752 = vmatpush.msra.mxu0 0.0
    %753 = vmatpush.msra.mxu0 0.0
    %754 = vmatpush.msra.mxu0 0.0
    %755 = vmatpush.msra.mxu0 0.0
    %756 = vmatpush.msra.mxu0 0.0
    %757 = vmatpush.msra.mxu0 %v680
    %758 = vmatmul.f32.gmra.mxu0 %v672
    %v759 = vpop.f32.mrf.mxu0
    %v760 = vadd.f32 0.0, %v759
    %761 = vdwg.mxu0
    %v762 = vadd.f32 %v634, %v700
    %v763 = vadd.f32 %v635, %v720
    %v764 = vadd.f32 %v636, %v740
    %v765 = vadd.f32 %v637, %v760
    %v766 = vld [vmem:[%s1] sm:$0xff]
    %v767 = vld [vmem:[%s1 + $0x8] sm:$0xff]
    %v768 = vld [vmem:[%s1 + $0x10] sm:$0xf]
    %s769 = scalar_lea.vmem %s0, 48
    %v770 = vld [vmem:[%s769] sm:$0xff]
    %774 = vst [vmem:[#allocation1] ss:$2 sm:$0xff] %v766
    %s775 = scalar_lea.vmem [#allocation1], 16
    %776 = vst [vmem:[%s775] ss:$2 sm:$0xff] %v767
    %s777 = scalar_lea.vmem [#allocation1], 32
    %778 = vst [vmem:[%s777] ss:$2 sm:$0xff] %v768
    %v779 = vld.sshfl [vmem:[#allocation1] sm:$0xff pattern:$0x75316420]
    %v780 = vld.sshfl [vmem:[#allocation1 + $0x8] sm:$0xff pattern:$0x75316420]
    %v781 = vld.sshfl [vmem:[#allocation1 + $0x10] sm:$0xff pattern:$0x75316420]
    %v782 = vld.sshfl [vmem:[#allocation1 + $0x18] sm:$0xff pattern:$0x75316420]
    %v783 = vld.sshfl [vmem:[#allocation1 + $0x20] sm:$0xff pattern:$0x75316420]
    %784 = vrot.lane.b32.xlu0 %v779, 96
    %v785 = vpop.permute.xlu0 %784
    %786 = vrot.lane.b32.xlu0 %v780, 96
    %v787 = vpop.permute.xlu0 %786
    %788 = vrot.lane.b32.xlu0 %v781, 96
    %v789 = vpop.permute.xlu0 %788
    %790 = vrot.lane.b32.xlu0 %v782, 96
    %v791 = vpop.permute.xlu0 %790
    %792 = vrot.lane.b32.xlu0 %v783, 96
    %v793 = vpop.permute.xlu0 %792
    %vm794 = vcmask 785408
    %v795 = vsel %vm794, %v785, %v787
    %v796 = vsel %vm794, %v787, %v789
    %v797 = vsel %vm794, %v789, %v791
    %v798 = vsel %vm794, %v791, %v793
    %v800 = vsel %vm61, %v770, 0
    %v802 = vsel %vm65, %v795, 0
    %v804 = vsel %vm65, %v796, 0
    %v806 = vsel %vm65, %v797, 0
    %v808 = vsel %vm65, %v798, 0
    %810 = vmatpush.msra.mxu0 0.0
    %811 = vmatpush.msra.mxu0 0.0
    %812 = vmatpush.msra.mxu0 0.0
    %813 = vmatpush.msra.mxu0 0.0
    %814 = vmatpush.msra.mxu0 0.0
    %815 = vmatpush.msra.mxu0 0.0
    %816 = vmatpush.msra.mxu0 0.0
    %817 = vmatpush.msra.mxu0 0.0
    %818 = vmatpush.msra.mxu0 0.0
    %819 = vmatpush.msra.mxu0 0.0
    %820 = vmatpush.msra.mxu0 0.0
    %821 = vmatpush.msra.mxu0 0.0
    %822 = vmatpush.msra.mxu0 0.0
    %823 = vmatpush.msra.mxu0 0.0
    %824 = vmatpush.msra.mxu0 0.0
    %825 = vmatpush.msra.mxu0 %v802
    %826 = vmatmul.f32.gmra.mxu0 %v800
    %v827 = vpop.f32.mrf.mxu0
    %v828 = vadd.f32 0.0, %v827
    %829 = vdwg.mxu0
    %830 = vmatpush.msra.mxu0 0.0
    %831 = vmatpush.msra.mxu0 0.0
    %832 = vmatpush.msra.mxu0 0.0
    %833 = vmatpush.msra.mxu0 0.0
    %834 = vmatpush.msra.mxu0 0.0
    %835 = vmatpush.msra.mxu0 0.0
    %836 = vmatpush.msra.mxu0 0.0
    %837 = vmatpush.msra.mxu0 0.0
    %838 = vmatpush.msra.mxu0 0.0
    %839 = vmatpush.msra.mxu0 0.0
    %840 = vmatpush.msra.mxu0 0.0
    %841 = vmatpush.msra.mxu0 0.0
    %842 = vmatpush.msra.mxu0 0.0
    %843 = vmatpush.msra.mxu0 0.0
    %844 = vmatpush.msra.mxu0 0.0
    %845 = vmatpush.msra.mxu0 %v804
    %846 = vmatmul.f32.gmra.mxu0 %v800
    %v847 = vpop.f32.mrf.mxu0
    %v848 = vadd.f32 0.0, %v847
    %849 = vdwg.mxu0
    %850 = vmatpush.msra.mxu0 0.0
    %851 = vmatpush.msra.mxu0 0.0
    %852 = vmatpush.msra.mxu0 0.0
    %853 = vmatpush.msra.mxu0 0.0
    %854 = vmatpush.msra.mxu0 0.0
    %855 = vmatpush.msra.mxu0 0.0
    %856 = vmatpush.msra.mxu0 0.0
    %857 = vmatpush.msra.mxu0 0.0
    %858 = vmatpush.msra.mxu0 0.0
    %859 = vmatpush.msra.mxu0 0.0
    %860 = vmatpush.msra.mxu0 0.0
    %861 = vmatpush.msra.mxu0 0.0
    %862 = vmatpush.msra.mxu0 0.0
    %863 = vmatpush.msra.mxu0 0.0
    %864 = vmatpush.msra.mxu0 0.0
    %865 = vmatpush.msra.mxu0 %v806
    %866 = vmatmul.f32.gmra.mxu0 %v800
    %v867 = vpop.f32.mrf.mxu0
    %v868 = vadd.f32 0.0, %v867
    %869 = vdwg.mxu0
    %870 = vmatpush.msra.mxu0 0.0
    %871 = vmatpush.msra.mxu0 0.0
    %872 = vmatpush.msra.mxu0 0.0
    %873 = vmatpush.msra.mxu0 0.0
    %874 = vmatpush.msra.mxu0 0.0
    %875 = vmatpush.msra.mxu0 0.0
    %876 = vmatpush.msra.mxu0 0.0
    %877 = vmatpush.msra.mxu0 0.0
    %878 = vmatpush.msra.mxu0 0.0
    %879 = vmatpush.msra.mxu0 0.0
    %880 = vmatpush.msra.mxu0 0.0
    %881 = vmatpush.msra.mxu0 0.0
    %882 = vmatpush.msra.mxu0 0.0
    %883 = vmatpush.msra.mxu0 0.0
    %884 = vmatpush.msra.mxu0 0.0
    %885 = vmatpush.msra.mxu0 %v808
    %886 = vmatmul.f32.gmra.mxu0 %v800
    %v887 = vpop.f32.mrf.mxu0
    %v888 = vadd.f32 0.0, %v887
    %889 = vdwg.mxu0
    %v890 = vadd.f32 %v762, %v828
    %v891 = vadd.f32 %v763, %v848
    %v892 = vadd.f32 %v764, %v868
    %v893 = vadd.f32 %v765, %v888
    %v894 = vld [vmem:[%s1] sm:$0xff]
    %v895 = vld [vmem:[%s1 + $0x8] sm:$0xff]
    %v896 = vld [vmem:[%s1 + $0x10] sm:$0xf]
    %s897 = scalar_lea.vmem %s0, 56
    %v898 = vld [vmem:[%s897] sm:$0xff]
    %902 = vst [vmem:[#allocation1] ss:$2 sm:$0xff] %v894
    %s903 = scalar_lea.vmem [#allocation1], 16
    %904 = vst [vmem:[%s903] ss:$2 sm:$0xff] %v895
    %s905 = scalar_lea.vmem [#allocation1], 32
    %906 = vst [vmem:[%s905] ss:$2 sm:$0xff] %v896
    %v907 = vld.sshfl [vmem:[#allocation1] sm:$0xff pattern:$0x75316420]
    %v908 = vld.sshfl [vmem:[#allocation1 + $0x8] sm:$0xff pattern:$0x75316420]
    %v909 = vld.sshfl [vmem:[#allocation1 + $0x10] sm:$0xff pattern:$0x75316420]
    %v910 = vld.sshfl [vmem:[#allocation1 + $0x18] sm:$0xff pattern:$0x75316420]
    %v911 = vld.sshfl [vmem:[#allocation1 + $0x20] sm:$0xff pattern:$0x75316420]
    %912 = vrot.lane.b32.xlu0 %v907, 95
    %v913 = vpop.permute.xlu0 %912
    %914 = vrot.lane.b32.xlu0 %v908, 95
    %v915 = vpop.permute.xlu0 %914
    %916 = vrot.lane.b32.xlu0 %v909, 95
    %v917 = vpop.permute.xlu0 %916
    %918 = vrot.lane.b32.xlu0 %v910, 95
    %v919 = vpop.permute.xlu0 %918
    %920 = vrot.lane.b32.xlu0 %v911, 95
    %v921 = vpop.permute.xlu0 %920
    %vm922 = vcmask 777216
    %v923 = vsel %vm922, %v913, %v915
    %v924 = vsel %vm922, %v915, %v917
    %v925 = vsel %vm922, %v917, %v919
    %v926 = vsel %vm922, %v919, %v921
    %v928 = vsel %vm61, %v898, 0
    %v930 = vsel %vm65, %v923, 0
    %v932 = vsel %vm65, %v924, 0
    %v934 = vsel %vm65, %v925, 0
    %v936 = vsel %vm65, %v926, 0
    %938 = vmatpush.msra.mxu0 0.0
    %939 = vmatpush.msra.mxu0 0.0
    %940 = vmatpush.msra.mxu0 0.0
    %941 = vmatpush.msra.mxu0 0.0
    %942 = vmatpush.msra.mxu0 0.0
    %943 = vmatpush.msra.mxu0 0.0
    %944 = vmatpush.msra.mxu0 0.0
    %945 = vmatpush.msra.mxu0 0.0
    %946 = vmatpush.msra.mxu0 0.0
    %947 = vmatpush.msra.mxu0 0.0
    %948 = vmatpush.msra.mxu0 0.0
    %949 = vmatpush.msra.mxu0 0.0
    %950 = vmatpush.msra.mxu0 0.0
    %951 = vmatpush.msra.mxu0 0.0
    %952 = vmatpush.msra.mxu0 0.0
    %953 = vmatpush.msra.mxu0 %v930
    %954 = vmatmul.f32.gmra.mxu0 %v928
    %v955 = vpop.f32.mrf.mxu0
    %v956 = vadd.f32 0.0, %v955
    %957 = vdwg.mxu0
    %958 = vmatpush.msra.mxu0 0.0
    %959 = vmatpush.msra.mxu0 0.0
    %960 = vmatpush.msra.mxu0 0.0
    %961 = vmatpush.msra.mxu0 0.0
    %962 = vmatpush.msra.mxu0 0.0
    %963 = vmatpush.msra.mxu0 0.0
    %964 = vmatpush.msra.mxu0 0.0
    %965 = vmatpush.msra.mxu0 0.0
    %966 = vmatpush.msra.mxu0 0.0
    %967 = vmatpush.msra.mxu0 0.0
    %968 = vmatpush.msra.mxu0 0.0
    %969 = vmatpush.msra.mxu0 0.0
    %970 = vmatpush.msra.mxu0 0.0
    %971 = vmatpush.msra.mxu0 0.0
    %972 = vmatpush.msra.mxu0 0.0
    %973 = vmatpush.msra.mxu0 %v932
    %974 = vmatmul.f32.gmra.mxu0 %v928
    %v975 = vpop.f32.mrf.mxu0
    %v976 = vadd.f32 0.0, %v975
    %977 = vdwg.mxu0
    %978 = vmatpush.msra.mxu0 0.0
    %979 = vmatpush.msra.mxu0 0.0
    %980 = vmatpush.msra.mxu0 0.0
    %981 = vmatpush.msra.mxu0 0.0
    %982 = vmatpush.msra.mxu0 0.0
    %983 = vmatpush.msra.mxu0 0.0
    %984 = vmatpush.msra.mxu0 0.0
    %985 = vmatpush.msra.mxu0 0.0
    %986 = vmatpush.msra.mxu0 0.0
    %987 = vmatpush.msra.mxu0 0.0
    %988 = vmatpush.msra.mxu0 0.0
    %989 = vmatpush.msra.mxu0 0.0
    %990 = vmatpush.msra.mxu0 0.0
    %991 = vmatpush.msra.mxu0 0.0
    %992 = vmatpush.msra.mxu0 0.0
    %993 = vmatpush.msra.mxu0 %v934
    %994 = vmatmul.f32.gmra.mxu0 %v928
    %v995 = vpop.f32.mrf.mxu0
    %v996 = vadd.f32 0.0, %v995
    %997 = vdwg.mxu0
    %998 = vmatpush.msra.mxu0 0.0
    %999 = vmatpush.msra.mxu0 0.0
    %1000 = vmatpush.msra.mxu0 0.0
    %1001 = vmatpush.msra.mxu0 0.0
    %1002 = vmatpush.msra.mxu0 0.0
    %1003 = vmatpush.msra.mxu0 0.0
    %1004 = vmatpush.msra.mxu0 0.0
    %1005 = vmatpush.msra.mxu0 0.0
    %1006 = vmatpush.msra.mxu0 0.0
    %1007 = vmatpush.msra.mxu0 0.0
    %1008 = vmatpush.msra.mxu0 0.0
    %1009 = vmatpush.msra.mxu0 0.0
    %1010 = vmatpush.msra.mxu0 0.0
    %1011 = vmatpush.msra.mxu0 0.0
    %1012 = vmatpush.msra.mxu0 0.0
    %1013 = vmatpush.msra.mxu0 %v936
    %1014 = vmatmul.f32.gmra.mxu0 %v928
    %v1015 = vpop.f32.mrf.mxu0
    %v1016 = vadd.f32 0.0, %v1015
    %1017 = vdwg.mxu0
    %v1018 = vadd.f32 %v890, %v956
    %v1019 = vadd.f32 %v891, %v976
    %v1020 = vadd.f32 %v892, %v996
    %v1021 = vadd.f32 %v893, %v1016
    %v1022 = vld [vmem:[%s1] sm:$0xff]
    %v1023 = vld [vmem:[%s1 + $0x8] sm:$0xff]
    %v1024 = vld [vmem:[%s1 + $0x10] sm:$0xf]
    %s1025 = scalar_lea.vmem %s0, 64
    %v1026 = vld [vmem:[%s1025] sm:$0xff]
    %1030 = vst [vmem:[#allocation1] ss:$2 sm:$0xff] %v1022
    %s1031 = scalar_lea.vmem [#allocation1], 16
    %1032 = vst [vmem:[%s1031] ss:$2 sm:$0xff] %v1023
    %s1033 = scalar_lea.vmem [#allocation1], 32
    %1034 = vst [vmem:[%s1033] ss:$2 sm:$0xff] %v1024
    %v1035 = vld.sshfl [vmem:[#allocation1] sm:$0xff pattern:$0x75316420]
    %v1036 = vld.sshfl [vmem:[#allocation1 + $0x8] sm:$0xff pattern:$0x75316420]
    %v1037 = vld.sshfl [vmem:[#allocation1 + $0x10] sm:$0xff pattern:$0x75316420]
    %v1038 = vld.sshfl [vmem:[#allocation1 + $0x18] sm:$0xff pattern:$0x75316420]
    %v1039 = vld.sshfl [vmem:[#allocation1 + $0x20] sm:$0xff pattern:$0x75316420]
    %1040 = vrot.lane.b32.xlu0 %v1035, 94
    %v1041 = vpop.permute.xlu0 %1040
    %1042 = vrot.lane.b32.xlu0 %v1036, 94
    %v1043 = vpop.permute.xlu0 %1042
    %1044 = vrot.lane.b32.xlu0 %v1037, 94
    %v1045 = vpop.permute.xlu0 %1044
    %1046 = vrot.lane.b32.xlu0 %v1038, 94
    %v1047 = vpop.permute.xlu0 %1046
    %1048 = vrot.lane.b32.xlu0 %v1039, 94
    %v1049 = vpop.permute.xlu0 %1048
    %vm1050 = vcmask 769024
    %v1051 = vsel %vm1050, %v1041, %v1043
    %v1052 = vsel %vm1050, %v1043, %v1045
    %v1053 = vsel %vm1050, %v1045, %v1047
    %v1054 = vsel %vm1050, %v1047, %v1049
    %v1056 = vsel %vm61, %v1026, 0
    %v1058 = vsel %vm65, %v1051, 0
    %v1060 = vsel %vm65, %v1052, 0
    %v1062 = vsel %vm65, %v1053, 0
    %v1064 = vsel %vm65, %v1054, 0
    %1066 = vmatpush.msra.mxu0 0.0
    %1067 = vmatpush.msra.mxu0 0.0
    %1068 = vmatpush.msra.mxu0 0.0
    %1069 = vmatpush.msra.mxu0 0.0
    %1070 = vmatpush.msra.mxu0 0.0
    %1071 = vmatpush.msra.mxu0 0.0
    %1072 = vmatpush.msra.mxu0 0.0
    %1073 = vmatpush.msra.mxu0 0.0
    %1074 = vmatpush.msra.mxu0 0.0
    %1075 = vmatpush.msra.mxu0 0.0
    %1076 = vmatpush.msra.mxu0 0.0
    %1077 = vmatpush.msra.mxu0 0.0
    %1078 = vmatpush.msra.mxu0 0.0
    %1079 = vmatpush.msra.mxu0 0.0
    %1080 = vmatpush.msra.mxu0 0.0
    %1081 = vmatpush.msra.mxu0 %v1058
    %1082 = vmatmul.f32.gmra.mxu0 %v1056
    %v1083 = vpop.f32.mrf.mxu0
    %v1084 = vadd.f32 0.0, %v1083
    %1085 = vdwg.mxu0
    %1086 = vmatpush.msra.mxu0 0.0
    %1087 = vmatpush.msra.mxu0 0.0
    %1088 = vmatpush.msra.mxu0 0.0
    %1089 = vmatpush.msra.mxu0 0.0
    %1090 = vmatpush.msra.mxu0 0.0
    %1091 = vmatpush.msra.mxu0 0.0
    %1092 = vmatpush.msra.mxu0 0.0
    %1093 = vmatpush.msra.mxu0 0.0
    %1094 = vmatpush.msra.mxu0 0.0
    %1095 = vmatpush.msra.mxu0 0.0
    %1096 = vmatpush.msra.mxu0 0.0
    %1097 = vmatpush.msra.mxu0 0.0
    %1098 = vmatpush.msra.mxu0 0.0
    %1099 = vmatpush.msra.mxu0 0.0
    %1100 = vmatpush.msra.mxu0 0.0
    %1101 = vmatpush.msra.mxu0 %v1060
    %1102 = vmatmul.f32.gmra.mxu0 %v1056
    %v1103 = vpop.f32.mrf.mxu0
    %v1104 = vadd.f32 0.0, %v1103
    %1105 = vdwg.mxu0
    %1106 = vmatpush.msra.mxu0 0.0
    %1107 = vmatpush.msra.mxu0 0.0
    %1108 = vmatpush.msra.mxu0 0.0
    %1109 = vmatpush.msra.mxu0 0.0
    %1110 = vmatpush.msra.mxu0 0.0
    %1111 = vmatpush.msra.mxu0 0.0
    %1112 = vmatpush.msra.mxu0 0.0
    %1113 = vmatpush.msra.mxu0 0.0
    %1114 = vmatpush.msra.mxu0 0.0
    %1115 = vmatpush.msra.mxu0 0.0
    %1116 = vmatpush.msra.mxu0 0.0
    %1117 = vmatpush.msra.mxu0 0.0
    %1118 = vmatpush.msra.mxu0 0.0
    %1119 = vmatpush.msra.mxu0 0.0
    %1120 = vmatpush.msra.mxu0 0.0
    %1121 = vmatpush.msra.mxu0 %v1062
    %1122 = vmatmul.f32.gmra.mxu0 %v1056
    %v1123 = vpop.f32.mrf.mxu0
    %v1124 = vadd.f32 0.0, %v1123
    %1125 = vdwg.mxu0
    %1126 = vmatpush.msra.mxu0 0.0
    %1127 = vmatpush.msra.mxu0 0.0
    %1128 = vmatpush.msra.mxu0 0.0
    %1129 = vmatpush.msra.mxu0 0.0
    %1130 = vmatpush.msra.mxu0 0.0
    %1131 = vmatpush.msra.mxu0 0.0
    %1132 = vmatpush.msra.mxu0 0.0
    %1133 = vmatpush.msra.mxu0 0.0
    %1134 = vmatpush.msra.mxu0 0.0
    %1135 = vmatpush.msra.mxu0 0.0
    %1136 = vmatpush.msra.mxu0 0.0
    %1137 = vmatpush.msra.mxu0 0.0
    %1138 = vmatpush.msra.mxu0 0.0
    %1139 = vmatpush.msra.mxu0 0.0
    %1140 = vmatpush.msra.mxu0 0.0
    %1141 = vmatpush.msra.mxu0 %v1064
    %1142 = vmatmul.f32.gmra.mxu0 %v1056
    %v1143 = vpop.f32.mrf.mxu0
    %v1144 = vadd.f32 0.0, %v1143
    %1145 = vdwg.mxu0
    %v1146 = vadd.f32 %v1018, %v1084
    %v1147 = vadd.f32 %v1019, %v1104
    %v1148 = vadd.f32 %v1020, %v1124
    %v1149 = vadd.f32 %v1021, %v1144
    %v1151 = vperm.slane %v24, 0
    %v1152 = vperm.slane %v24, 1
    %v1153 = vperm.slane %v24, 2
    %v1154 = vperm.slane %v24, 3
    %v1159 = vmul.f32 %v1146, %v1151
    %v1160 = vmul.f32 %v1147, %v1152
    %v1161 = vmul.f32 %v1148, %v1153
    %v1162 = vmul.f32 %v1149, %v1154
    %v1163 = vadd.f32 %v1159, %v1160
    %v1164 = vadd.f32 %v1163, %v1161
    %v1165 = vadd.f32 %v1164, %v1162
    %1166 = vadd.xlane.f32.xlu0 %v1165
    %v1167 = vpop.xlane.xlu0 %1166
    %v1168 = vmul.f32 %v1167, 0.0025510204
    %v1169 = vsub.f32 %v1146, %v1168
    %v1170 = vsub.f32 %v1147, %v1168
    %v1171 = vsub.f32 %v1148, %v1168
    %v1172 = vsub.f32 %v1149, %v1168
    %v1173 = vmul.f32 %v1169, %v1169
    %v1174 = vmul.f32 %v1170, %v1170
    %v1175 = vmul.f32 %v1171, %v1171
    %v1176 = vmul.f32 %v1172, %v1172
    %v1177 = vmul.f32 %v1173, %v1151
    %v1178 = vmul.f32 %v1174, %v1152
    %v1179 = vmul.f32 %v1175, %v1153
    %v1180 = vmul.f32 %v1176, %v1154
    %v1181 = vadd.f32 %v1177, %v1178
    %v1182 = vadd.f32 %v1181, %v1179
    %v1183 = vadd.f32 %v1182, %v1180
    %1184 = vadd.xlane.f32.xlu0 %v1183
    %v1185 = vpop.xlane.xlu0 %1184
    %v1186 = vmul.f32 %v1185, 0.0025510204
    %v1187 = vld [vmem:[%s2] sm:$0xff]
    %v1188 = vadd.f32 %v1186, 1e-05
    %v1189 = vrsqrt.pop %v1188
    %v1190 = vmul.f32 %v1189, %v1188
    %v1191 = vmul.f32 %v1190, %v1189
    %v1192 = vmul.f32 0.5, %v1191
    %v1193 = vsub.f32 1.5, %v1192
    %v1194 = vmul.f32 %v1189, %v1193
    %vm1195 = vweird.f32 %v1188
    %vm1196 = vweird.f32 %v1189
    %vm1197 = vmor %vm1195, %vm1196
    %v1198 = vsel %vm1197, %v1189, %v1194
    %v1199 = vmul.f32 %v1187, %v1198
    %1201 = vset.pattern.permute.xlu0 0
    %1202 = vperm.xlu0 %1201, %v1199
    %v1203 = vpop.permute.xlu0 %1202
    %v1205 = vmul.f32 %v1169, %v1203
    %v1206 = vmul.f32 %v1170, %v1203
    %v1207 = vmul.f32 %v1171, %v1203
    %v1208 = vmul.f32 %v1172, %v1203
    %v1209 = vld [vmem:[%s3] sm:$0xff]
    %1211 = vset.pattern.permute.xlu0 0
    %1212 = vperm.xlu0 %1211, %v1209
    %v1213 = vpop.permute.xlu0 %1212
    %v1215 = vadd.f32 %v1205, %v1213
    %v1216 = vadd.f32 %v1206, %v1213
    %v1217 = vadd.f32 %v1207, %v1213
    %v1218 = vadd.f32 %v1208, %v1213
    %vm1219 = vcmp.gt.f32.partialorder %v1215, 0.5
    %vm1220 = vcmp.gt.f32.partialorder %v1216, 0.5
    %vm1221 = vcmp.gt.f32.partialorder %v1217, 0.5
    %vm1222 = vcmp.gt.f32.partialorder %v1218, 0.5
    %v1223 = vsel %vm1219, 1, 0
    %v1224 = vsel %vm1220, 1, 0
    %v1225 = vsel %vm1221, 1, 0
    %v1226 = vsel %vm1222, 1, 0
    %v1227 = vcvt.s32.f32 %v1223
    %v1228 = vcvt.s32.f32 %v1224
    %v1229 = vcvt.s32.f32 %v1225
    %v1230 = vcvt.s32.f32 %v1226
    %1231 = vst [vmem:[%s5] sm:$0xff] %v1227
    %1232 = vst [vmem:[%s5 + $0x8] sm:$0xff] %v1228
    %1233 = vst [vmem:[%s5 + $0x10] sm:$0xff] %v1229
    %1234 = vst [vmem:[%s5 + $0x18] sm:$0xff] %v1230
    %v1235 = vmul.f32 %v1215, 0.2
    %v1236 = vmul.f32 %v1216, 0.2
    %v1237 = vmul.f32 %v1217, 0.2
    %v1238 = vmul.f32 %v1218, 0.2
    %v1239 = vsub.f32 1.0, %v1227
    %v1240 = vsub.f32 1.0, %v1228
    %v1241 = vsub.f32 1.0, %v1229
    %v1242 = vsub.f32 1.0, %v1230
    %v1243 = vmul.f32 %v1235, %v1239
    %v1244 = vmul.f32 %v1236, %v1240
    %v1245 = vmul.f32 %v1237, %v1241
    %v1246 = vmul.f32 %v1238, %v1242
    %1247 = vst [vmem:[%s6] sm:$0xff] %v1243
    %1248 = vst [vmem:[%s6 + $0x8] sm:$0xff] %v1244
    %1249 = vst [vmem:[%s6 + $0x10] sm:$0xff] %v1245
    %1250 = vst [vmem:[%s6 + $0x18] sm:$0xff] %v1246
    %v1251 = vmul.f32 %v1227, %v1151
    %v1252 = vmul.f32 %v1228, %v1152
    %v1253 = vmul.f32 %v1229, %v1153
    %v1254 = vmul.f32 %v1230, %v1154
    %v1255 = vadd.f32 %v1251, %v1252
    %v1256 = vadd.f32 %v1255, %v1253
    %v1257 = vadd.f32 %v1256, %v1254
    %1258 = vadd.xlane.f32.xlu0 %v1257
    %v1259 = vpop.xlane.xlu0 %1258
    %v1260 = vrot.slane %v1259, 4
    %v1261 = vadd.f32 %v1259, %v1260
    %v1262 = vrot.slane %v1261, 2
    %v1263 = vadd.f32 %v1261, %v1262
    %v1264 = vrot.slane %v1263, 1
    %v1265 = vadd.f32 %v1263, %v1264
    %s1266 = vtos %v1265
    %s1267 = smul.f32 %s1266, 0.00031887754
    %s1268 = scalar_lea.smem [#allocation2], 0
    %1269 = sst [smem:[%s1268]] %s1267
    // Predicated region
    $region22: #{snn_2d_aspp_bn_forward.1} parent=1 // pred_check
      _
    $region23: #{snn_2d_aspp_bn_forward.1} parent=1 // pred_check_branch
      %1271 = sbr.rel (0) target = $region25
    $region24: #{snn_2d_aspp_bn_forward.1} parent=1 // pred_region
      _
    $region25: #{snn_2d_aspp_bn_forward.1} parent=1 // pred_fallthru
      _
    // Predicated region
    $region26: #{snn_2d_aspp_bn_forward.1} parent=1 // pred_check
      _
    $region27: #{snn_2d_aspp_bn_forward.1} parent=1 // pred_check_branch
      %1273 = sbr.rel (0) target = $region29
    $region28: #{snn_2d_aspp_bn_forward.1} parent=1 // pred_region
      _
    $region29: #{snn_2d_aspp_bn_forward.1} parent=1 // pred_fallthru
      _
    // Predicated region
    $region30: #{snn_2d_aspp_bn_forward.1} parent=1 // pred_check
      _
    $region31: #{snn_2d_aspp_bn_forward.1} parent=1 // pred_check_branch
      %1275 = sbr.rel (0) target = $region33
    $region32: #{snn_2d_aspp_bn_forward.1} parent=1 // pred_region
      %1277 = vsyncadd [#allocation3], 0
      %s1279 = sshll.u32 %s7, 4
      %s1280 = int_to_ptr.hbm [resolvable:$true] %s1279
      %1282 = dma.smem_to_hbm [#allocation2], 16, %s1280, [#allocation3]
    $region33: #{snn_2d_aspp_bn_forward.1} parent=1 // pred_fallthru
      _
    // Predicated region
    $region34: #{snn_2d_aspp_bn_forward.1} parent=1 // pred_check
      _
    $region35: #{snn_2d_aspp_bn_forward.1} parent=1 // pred_check_branch
      %1284 = sbr.rel (0) target = $region37
    $region36: #{snn_2d_aspp_bn_forward.1} parent=1 // pred_region
      _
    $region37: #{snn_2d_aspp_bn_forward.1} parent=1 // pred_fallthru
      _
    // Predicated region
    $region38: #{snn_2d_aspp_bn_forward.1} parent=1 // pred_check
      _
    $region39: #{snn_2d_aspp_bn_forward.1} parent=1 // pred_check_branch
      %1286 = sbr.rel (0) target = $region41
    $region40: #{snn_2d_aspp_bn_forward.1} parent=1 // pred_region
      _
    $region41: #{snn_2d_aspp_bn_forward.1} parent=1 // pred_fallthru
      _
    // Predicated region
    $region42: #{snn_2d_aspp_bn_forward.1} parent=1 // pred_check
      _
    $region43: #{snn_2d_aspp_bn_forward.1} parent=1 // pred_check_branch
      %1288 = sbr.rel (0) target = $region45
    $region44: #{snn_2d_aspp_bn_forward.1} parent=1 // pred_region
      %1290 = dma.done [#allocation3], 16
    $region45: #{snn_2d_aspp_bn_forward.1} parent=1 // pred_fallthru
      _
    %1291 = sfence
    %1292 = vsyncpa [#allocation3], 1

</llo_original>
